<compile_context>
chip_gen: v7x
topology: tpu7x:2x2x1
jax: 0.10.0
libtpu: 0.0.40
codegen_flags: <defaults>
</compile_context>

<pallas_src>
import functools

import jax
import jax.numpy as jnp
from jax.experimental import pallas as pl
from jax.experimental.pallas import tpu as pltpu


def _round_up(n, m):
    return ((n + m - 1) // m) * m


def _resident_spec(shape):
    """BlockSpec for a grid-invariant (resident) operand: single-buffered if supported."""
    index_map = lambda i: (0,) * len(shape)
    if hasattr(pl, "Buffered"):
        try:
            return pl.BlockSpec(shape, index_map, pipeline_mode=pl.Buffered(1))
        except TypeError:
            pass
    return pl.BlockSpec(shape, index_map)


def _resident_buffer_count():
    if hasattr(pl, "Buffered"):
        try:
            pl.BlockSpec((8, 128), lambda i: (0, 0), pipeline_mode=pl.Buffered(1))
            return 1
        except TypeError:
            pass
    return 2


_W_BUFS = _resident_buffer_count()


def _vmem_capacity_bytes():
    try:
        info = pltpu.get_tpu_info()
        cap = getattr(info, "vmem_capacity_bytes", None)
        if cap:
            return int(cap)
    except Exception:
        pass
    return 64 * 1024 * 1024   # conservative (v7x per-TC)


def fused_mlp_kernel(x_ref, w1_ref, b1_ref, w2_ref, b2_ref, out_ref):
    # x_ref:  (TB, INp)   f32  (cast to bf16 in-kernel; VALU has slack under MXU)
    # w1_ref: (INp, Hp)   bf16 (pre-transposed, resident)
    # b1_ref: (1, Hp)     f32  (resident)
    # w2_ref: (Hp, OUTp)  bf16 (pre-transposed, resident)
    # b2_ref: (1, OUTp)   f32  (resident)
    # out_ref:(TB, OUTp)  f32
    x = x_ref[...].astype(jnp.bfloat16)
    h = jnp.dot(x, w1_ref[...], preferred_element_type=jnp.float32)
    h = jnp.maximum(h + b1_ref[...], 0.0)          # bias + ReLU in f32
    h = h.astype(jnp.bfloat16)                     # bf16 into the second MXU pass
    y = jnp.dot(h, w2_ref[...], preferred_element_type=jnp.float32)
    out_ref[...] = (y + b2_ref[...]).astype(out_ref.dtype)


def prepare_params(w1, b1, w2, b2, lane=128):
    """One-time parameter preprocessing (NOT in the per-call hot path).

    PyTorch nn.Linear layout (out_features, in_features) ->
      transposed (in, out), bf16, zero-padded so every lane dim is a 128-multiple.
    """
    H, IN = w1.shape
    OUT = w2.shape[0]
    INp, Hp, OUTp = _round_up(IN, lane), _round_up(H, lane), _round_up(OUT, lane)

    w1_t = jnp.zeros((INp, Hp), jnp.bfloat16).at[:IN, :H].set(w1.T.astype(jnp.bfloat16))
    w2_t = jnp.zeros((Hp, OUTp), jnp.bfloat16).at[:H, :OUT].set(w2.T.astype(jnp.bfloat16))
    b1_p = jnp.zeros((1, Hp), jnp.float32).at[0, :H].set(b1.astype(jnp.float32))
    b2_p = jnp.zeros((1, OUTp), jnp.float32).at[0, :OUT].set(b2.astype(jnp.float32))
    return w1_t, b1_p, w2_t, b2_p


@functools.partial(jax.jit, static_argnames=("out_features", "tb"))
def pure_my_linear(x, w1_t, b1_p, w2_t, b2_p, *, out_features, tb=512):
    """x: (B, IN) f32.  Params from prepare_params(). Returns (B, out_features) f32."""
    orig_dtype = x.dtype
    B, IN = x.shape
    INp, Hp = w1_t.shape
    OUTp = w2_t.shape[1]

    # Only pad the K (feature) dim if needed; batch dim uses Pallas partial-block
    # masking (garbage rows never reach the output: edge stores are masked).
    if IN != INp:
        x = jnp.pad(x, ((0, 0), (0, INp - IN)))

    # Batch tile: aim for >= 2 grid steps (dual-TC on v7x), 128-multiple (MXU/bf16
    # friendly), default tb=512 to amortize the ~0.35 us/step grid overhead.
    TB = min(tb, _round_up(pl.cdiv(B, 2), 128))
    TB = max(_round_up(TB, 128), 128)
    grid = (pl.cdiv(B, TB),)

    # VMEM budget: streamed blocks double-buffered, resident params single-buffered
    # (when supported), plus the in-kernel bf16 copies of x and h, plus headroom.
    vmem_bytes = (
        2 * TB * INp * 4                                    # x blocks (f32, 2 bufs)
        + 2 * TB * OUTp * 4                                 # out blocks (f32, 2 bufs)
        + _W_BUFS * (INp * Hp * 2 + Hp * OUTp * 2 + Hp * 4 + OUTp * 4)  # resident params
        + TB * INp * 2                                      # in-kernel bf16 x copy
        + TB * Hp * (4 + 2)                                 # f32 hidden + bf16 copy
        + (4 << 20)                                         # headroom
    )
    cap = _vmem_capacity_bytes()
    vmem_limit = max(min(vmem_bytes, int(cap * 0.8)), 16 << 20)

    nblocks = grid[0]
    flops = 2 * nblocks * TB * (INp * Hp + Hp * OUTp)
    bytes_accessed = (B * INp * 4 + INp * Hp * 2 + Hp * OUTp * 2
                      + Hp * 4 + OUTp * 4 + B * OUTp * 4)

    out = pl.pallas_call(
        fused_mlp_kernel,
        out_shape=jax.ShapeDtypeStruct((B, OUTp), jnp.float32),
        grid_spec=pltpu.PrefetchScalarGridSpec(
            num_scalar_prefetch=0,
            grid=grid,
            in_specs=[
                pl.BlockSpec((TB, INp), lambda i: (i, 0)),   # stream x tiles (default 2 bufs)
                _resident_spec((INp, Hp)),                   # W1 resident, single-buffered
                _resident_spec((1, Hp)),                     # b1 resident
                _resident_spec((Hp, OUTp)),                  # W2 resident
                _resident_spec((1, OUTp)),                   # b2 resident
            ],
            out_specs=pl.BlockSpec((TB, OUTp), lambda i: (i, 0)),
        ),
        compiler_params=pltpu.CompilerParams(
            dimension_semantics=("parallel",),   # megacore / dual-TC sharding over batch
            vmem_limit_bytes=vmem_limit,
        ),
        cost_estimate=pl.CostEstimate(
            flops=flops, transcendentals=0, bytes_accessed=bytes_accessed),
    )(x, w1_t, b1_p, w2_t, b2_p)

    return out[:, :out_features].astype(orig_dtype)


if __name__ == "__main__":
    # Small shapes consistent with Linear(in,1000) -> ReLU -> Linear(1000,out),
    # scaled down; OUT=250 deliberately non-128-aligned to exercise the pad path,
    # B=512 with tb=256 gives a 2-step grid (exercises the pipeline / dual-TC path).
    B, IN, H, OUT = 512, 512, 384, 250

    key = jax.random.PRNGKey(0)
    kx, kw1, kb1, kw2, kb2 = jax.random.split(key, 5)

    x = jax.random.normal(kx, (B, IN), dtype=jnp.float32)
    # Deterministic synthetic parameters (myLinear ~ nn.Linear semantics, (out, in) layout).
    w1 = jax.random.normal(kw1, (H, IN), dtype=jnp.float32) * (1.0 / jnp.sqrt(IN))
    b1 = jax.random.normal(kb1, (H,), dtype=jnp.float32) * 0.01
    w2 = jax.random.normal(kw2, (OUT, H), dtype=jnp.float32) * (1.0 / jnp.sqrt(H))
    b2 = jax.random.normal(kb2, (OUT,), dtype=jnp.float32) * 0.01

    # One-time parameter preprocessing (transpose + bf16 + pad), then run.
    w1_t, b1_p, w2_t, b2_p = prepare_params(w1, b1, w2, b2)
    out = pure_my_linear(x, w1_t, b1_p, w2_t, b2_p, out_features=OUT, tb=256)
    out = jax.block_until_ready(out)
    assert out.shape == (B, OUT)

    # Reference with matched bf16 casts (tight tolerance).
    x_bf = x.astype(jnp.bfloat16)
    h_ref = jnp.dot(x_bf, w1.astype(jnp.bfloat16).T, preferred_element_type=jnp.float32) + b1
    h_ref = jnp.maximum(h_ref, 0.0).astype(jnp.bfloat16)
    ref_bf = jnp.dot(h_ref, w2.astype(jnp.bfloat16).T, preferred_element_type=jnp.float32) + b2
    assert jnp.allclose(out, ref_bf, atol=1e-3, rtol=1e-3)

    # Sanity check vs. full-f32 reference (loose tol covers bf16 quantization).
    ref_f32 = jnp.maximum(x @ w1.T + b1, 0.0) @ w2.T + b2
    assert jnp.allclose(out, ref_f32, atol=1e-1, rtol=1e-1)

    print("KERNEL_OK")
</pallas_src>

<mosaic_0001>
module attributes {stable_mosaic.version = 11 : i64} {
  func.func @fused_mlp_kernel(%arg0: i32, %arg1: memref<256x512xf32, #tpu.memory_space<vmem>>, %arg2: memref<512x384xbf16, #tpu.memory_space<vmem>>, %arg3: memref<1x384xf32, #tpu.memory_space<vmem>>, %arg4: memref<384x256xbf16, #tpu.memory_space<vmem>>, %arg5: memref<1x256xf32, #tpu.memory_space<vmem>>, %arg6: memref<256x256xf32, #tpu.memory_space<vmem>>) attributes {dimension_semantics = [#tpu.dimension_semantics<parallel>], iteration_bounds = array<i64: 2>, scalar_prefetch = 0 : i64, scratch_operands = 0 : i64, tpu.core_type = #tpu.core_type<tc>, window_params = [{transform_indices = @transform_0, window_bounds = array<i64: 256, 512>}, {pipeline_mode = #tpu.pipeline_mode<synchronous>, transform_indices = @transform_1, window_bounds = array<i64: 512, 384>}, {pipeline_mode = #tpu.pipeline_mode<synchronous>, transform_indices = @transform_2, window_bounds = array<i64: 1, 384>}, {pipeline_mode = #tpu.pipeline_mode<synchronous>, transform_indices = @transform_3, window_bounds = array<i64: 384, 256>}, {pipeline_mode = #tpu.pipeline_mode<synchronous>, transform_indices = @transform_4, window_bounds = array<i64: 1, 256>}, {transform_indices = @transform_5, window_bounds = array<i64: 256, 256>}]} {
    %c0 = arith.constant 0 : index
    %c0_0 = arith.constant 0 : index
    %0 = vector.load %arg1[%c0, %c0_0] : memref<256x512xf32, #tpu.memory_space<vmem>>, vector<256x512xf32>
    %1 = arith.truncf %0 : vector<256x512xf32> to vector<256x512xbf16>
    %c0_1 = arith.constant 0 : index
    %c0_2 = arith.constant 0 : index
    %2 = vector.load %arg2[%c0_1, %c0_2] : memref<512x384xbf16, #tpu.memory_space<vmem>>, vector<512x384xbf16>
    %cst = arith.constant dense<0.000000e+00> : vector<256x384xf32>
    %3 = tpu.matmul %1, %2, %cst {dimension_numbers = #tpu.dot_dimension_numbers<[1], [0], [0], [1], [0, 0, 1, 1], [], []>} : vector<256x512xbf16>, vector<512x384xbf16>, vector<256x384xf32> -> vector<256x384xf32>
    %c0_3 = arith.constant 0 : index
    %c0_4 = arith.constant 0 : index
    %4 = vector.load %arg3[%c0_3, %c0_4] : memref<1x384xf32, #tpu.memory_space<vmem>>, vector<1x384xf32>
    %5 = vector.broadcast %4 : vector<1x384xf32> to vector<256x384xf32>
    %6 = arith.addf %3, %5 : vector<256x384xf32>
    %cst_5 = arith.constant 0.000000e+00 : f32
    %7 = vector.broadcast %cst_5 : f32 to vector<256x384xf32>
    %8 = arith.maximumf %6, %7 : vector<256x384xf32>
    %9 = arith.truncf %8 : vector<256x384xf32> to vector<256x384xbf16>
    %c0_6 = arith.constant 0 : index
    %c0_7 = arith.constant 0 : index
    %10 = vector.load %arg4[%c0_6, %c0_7] : memref<384x256xbf16, #tpu.memory_space<vmem>>, vector<384x256xbf16>
    %cst_8 = arith.constant dense<0.000000e+00> : vector<256x256xf32>
    %11 = tpu.matmul %9, %10, %cst_8 {dimension_numbers = #tpu.dot_dimension_numbers<[1], [0], [0], [1], [0, 0, 1, 1], [], []>} : vector<256x384xbf16>, vector<384x256xbf16>, vector<256x256xf32> -> vector<256x256xf32>
    %c0_9 = arith.constant 0 : index
    %c0_10 = arith.constant 0 : index
    %12 = vector.load %arg5[%c0_9, %c0_10] : memref<1x256xf32, #tpu.memory_space<vmem>>, vector<1x256xf32>
    %13 = vector.broadcast %12 : vector<1x256xf32> to vector<256x256xf32>
    %14 = arith.addf %11, %13 : vector<256x256xf32>
    %c0_11 = arith.constant 0 : index
    %c0_12 = arith.constant 0 : index
    %15 = vector.load %arg6[%c0_11, %c0_12] : memref<256x256xf32, #tpu.memory_space<vmem>>, vector<256x256xf32>
    tpu.vector_store %arg6[%c0_11, %c0_12], %14 {strides = array<i32>} : memref<256x256xf32, #tpu.memory_space<vmem>>, vector<256x256xf32>,
    return
  }
  func.func @transform_0(%arg0: i32) -> (i32, i32) {
    %c0_i32 = arith.constant 0 : i32
    %c0_i32_0 = arith.constant 0 : i32
    return %arg0, %c0_i32 : i32, i32
  }
  func.func @transform_1(%arg0: i32) -> (i32, i32) {
    %c0_i32 = arith.constant 0 : i32
    %c0_i32_0 = arith.constant 0 : i32
    %c0_i32_1 = arith.constant 0 : i32
    return %c0_i32, %c0_i32_0 : i32, i32
  }
  func.func @transform_2(%arg0: i32) -> (i32, i32) {
    %c0_i32 = arith.constant 0 : i32
    %c0_i32_0 = arith.constant 0 : i32
    %c0_i32_1 = arith.constant 0 : i32
    return %c0_i32, %c0_i32_0 : i32, i32
  }
  func.func @transform_3(%arg0: i32) -> (i32, i32) {
    %c0_i32 = arith.constant 0 : i32
    %c0_i32_0 = arith.constant 0 : i32
    %c0_i32_1 = arith.constant 0 : i32
    return %c0_i32, %c0_i32_0 : i32, i32
  }
  func.func @transform_4(%arg0: i32) -> (i32, i32) {
    %c0_i32 = arith.constant 0 : i32
    %c0_i32_0 = arith.constant 0 : i32
    %c0_i32_1 = arith.constant 0 : i32
    return %c0_i32, %c0_i32_0 : i32, i32
  }
  func.func @transform_5(%arg0: i32) -> (i32, i32) {
    %c0_i32 = arith.constant 0 : i32
    %c0_i32_0 = arith.constant 0 : i32
    return %arg0, %c0_i32 : i32, i32
  }
}

</mosaic_0001>

<llo_original>
// kernel: pure_my_linear.1
$region0: #{pure_my_linear.1}
  #allocation0 [shape = 'u32[]', space=smem, size = 0x4, offset = 0x4, fixed_abs, tag = 'smem constant byte address 0x4 - core index']
  #allocation1 [shape = 'u32[144,128]{1,0:T(1,128)}', space=vmem, size = 0x12000, scoped, tag = 'internal scratch']
  %s0 = inlined_call_operand.hbm [shape: f32[512,512], index: 0, kind: input, shape index: {}]
  %s1 = inlined_call_operand.hbm [shape: bf16[512,384], index: 1, kind: input, shape index: {}]
  %s2 = inlined_call_operand.vmem [shape: f32[1,384], index: 2, kind: input, shape index: {}]
  %s3 = inlined_call_operand.hbm [shape: bf16[384,256], index: 3, kind: input, shape index: {}]
  %s4 = inlined_call_operand.vmem [shape: f32[1,256], index: 4, kind: input, shape index: {}]
  %s5 = inlined_call_operand.hbm [shape: f32[512,256], index: 5, kind: output, shape index: {}]
  %s6 = sld [smem:[#allocation0]]
  $region65: #{pure_my_linear.1} parent=0
    _
  %s8 = ssub.s32 1, %s6
  %s9 = scalar_select 0, %s8, %s6
  $region1: #{pure_my_linear.1} parent=0
    #allocation2 [shape = 'u8[1048576]{0}', space=vmem, size = 0x100000, scoped, tag = 'input window, operand 0']
    #allocation3 [shape = 's32[2]{0}', space=sflag, size = 0x8, scoped, tag = 'scoped memory for pure_my_linear.1']
    #allocation4 [shape = 's32[2]{0}', space=sflag, size = 0x8, scoped, tag = 'scoped memory for pure_my_linear.1']
    #allocation5 [shape = 'u8[393216]{0}', space=vmem, size = 0x60000, scoped, tag = 'input window, operand 1, single buffered']
    #allocation6 [shape = 's32[1]{0}', space=sflag, size = 0x4, scoped, tag = 'scoped memory for pure_my_linear.1']
    #allocation7 [shape = 'u8[196608]{0}', space=vmem, size = 0x30000, scoped, tag = 'input window, operand 3, single buffered']
    #allocation8 [shape = 'u8[524288]{0}', space=vmem, size = 0x80000, scoped, tag = 'output window, operand 0']
    %10 = vsyncpa [#allocation3], 0
    %s11 = scalar_lea.sflag [#allocation3], 1
    %12 = vsyncpa %s11, 0
    %13 = vsyncpa [#allocation6], 0
    %14 = vsyncpa [#allocation4], 0
    %s15 = scalar_lea.sflag [#allocation4], 1
    %16 = vsyncpa %s15, 0
    loop: start=0, step=1, limit=4
    $region2: #{pure_my_linear.1} parent=1 // loop_pre_header
      _
    $region3: #{pure_my_linear.1} parent=1 // loop_header
      %s18 = sphi 0, %s22
      %p19 = scmp.ge.s32.totalorder %s18, 4
      %s28 = sphi 0, %s30
      %s31 = sphi 0, %s28
      %s32 = sphi 0, %s31
      %s48 = sphi 0, %s32
      %s52 = sphi 0, %s52
      %s54 = sphi 0, %s52
      %s55 = sphi 0, %s54
      %s69 = sphi 0, %s55
      %s73 = sphi 0, %s73
      %s75 = sphi 0, %s73
      %s76 = sphi 0, %s75
      %s90 = sphi 0, %s76
      %s94 = sphi 0, %s94
      %s96 = sphi 0, %s94
      %s97 = sphi 0, %s96
      %s111 = sphi 0, %s97
      %s115 = sphi 0, %s115
      %s117 = sphi 0, %s115
      %s118 = sphi 0, %s117
      %s132 = sphi 0, %s118
      %s138 = sphi 0, %s140
      %s141 = sphi 0, %s138
      %s142 = sphi 0, %s141
      %s158 = sphi 0, %s142
    $region4: #{pure_my_linear.1} parent=1 // loop_header_branch
      %21 = sbr.rel (%p19) target = $region8
    $region5: #{pure_my_linear.1} parent=1 // loop_body
      %s23 = ssub.s32 %s18, 1
      %s24 = ssub.s32 %s18, 2
      %s25 = sadd.s32 %s18, 1
      %s26 = ssub.s32 %s18, %s25
      %p27 = scmp.eq.s32.totalorder %s26, 0
      %s29 = sadd.s32 %s28, 1
      %s30 = scalar_select %p27, %s28, %s29
      %p33 = pneg %p27
      %p34 = scmp.eq.s32.totalorder %s18, 1
      %p35 = por %p33, %p34
      %p36 = scmp.ne.s32.totalorder %s28, %s31
      %p37 = scmp.eq.s32.totalorder %s18, 0
      %p38 = por %p36, %p37
      %p39 = scmp.ne.s32.totalorder %s28, %s31
      %p40 = scmp.eq.s32.totalorder %s23, 1
      %p41 = por %p39, %p40
      %p42 = scmp.ne.s32.totalorder %s31, %s32
      %p43 = scmp.eq.s32.totalorder %s23, 0
      %p44 = por %p42, %p43
      %p45 = scmp.ne.s32.totalorder %s31, %s32
      %p46 = scmp.eq.s32.totalorder %s24, 1
      %p47 = por %p45, %p46
      %p49 = scmp.ne.s32.totalorder %s32, %s48
      %p50 = scmp.eq.s32.totalorder %s24, 0
      %p51 = por %p49, %p50
      %s53 = sadd.s32 %s52, 1
      %p56 = scmp.eq.s32.totalorder %s18, 1
      %p57 = scmp.ne.s32.totalorder %s52, %s54
      %p58 = scmp.eq.s32.totalorder %s18, 0
      %p59 = por %p57, %p58
      %p60 = scmp.ne.s32.totalorder %s52, %s54
      %p61 = scmp.eq.s32.totalorder %s23, 1
      %p62 = por %p60, %p61
      %p63 = scmp.ne.s32.totalorder %s54, %s55
      %p64 = scmp.eq.s32.totalorder %s23, 0
      %p65 = por %p63, %p64
      %p66 = scmp.ne.s32.totalorder %s54, %s55
      %p67 = scmp.eq.s32.totalorder %s24, 1
      %p68 = por %p66, %p67
      %p70 = scmp.ne.s32.totalorder %s55, %s69
      %p71 = scmp.eq.s32.totalorder %s24, 0
      %p72 = por %p70, %p71
      %s74 = sadd.s32 %s73, 1
      %p77 = scmp.eq.s32.totalorder %s18, 1
      %p78 = scmp.ne.s32.totalorder %s73, %s75
      %p79 = scmp.eq.s32.totalorder %s18, 0
      %p80 = por %p78, %p79
      %p81 = scmp.ne.s32.totalorder %s73, %s75
      %p82 = scmp.eq.s32.totalorder %s23, 1
      %p83 = por %p81, %p82
      %p84 = scmp.ne.s32.totalorder %s75, %s76
      %p85 = scmp.eq.s32.totalorder %s23, 0
      %p86 = por %p84, %p85
      %p87 = scmp.ne.s32.totalorder %s75, %s76
      %p88 = scmp.eq.s32.totalorder %s24, 1
      %p89 = por %p87, %p88
      %p91 = scmp.ne.s32.totalorder %s76, %s90
      %p92 = scmp.eq.s32.totalorder %s24, 0
      %p93 = por %p91, %p92
      %s95 = sadd.s32 %s94, 1
      %p98 = scmp.eq.s32.totalorder %s18, 1
      %p99 = scmp.ne.s32.totalorder %s94, %s96
      %p100 = scmp.eq.s32.totalorder %s18, 0
      %p101 = por %p99, %p100
      %p102 = scmp.ne.s32.totalorder %s94, %s96
      %p103 = scmp.eq.s32.totalorder %s23, 1
      %p104 = por %p102, %p103
      %p105 = scmp.ne.s32.totalorder %s96, %s97
      %p106 = scmp.eq.s32.totalorder %s23, 0
      %p107 = por %p105, %p106
      %p108 = scmp.ne.s32.totalorder %s96, %s97
      %p109 = scmp.eq.s32.totalorder %s24, 1
      %p110 = por %p108, %p109
      %p112 = scmp.ne.s32.totalorder %s97, %s111
      %p113 = scmp.eq.s32.totalorder %s24, 0
      %p114 = por %p112, %p113
      %s116 = sadd.s32 %s115, 1
      %p119 = scmp.eq.s32.totalorder %s18, 1
      %p120 = scmp.ne.s32.totalorder %s115, %s117
      %p121 = scmp.eq.s32.totalorder %s18, 0
      %p122 = por %p120, %p121
      %p123 = scmp.ne.s32.totalorder %s115, %s117
      %p124 = scmp.eq.s32.totalorder %s23, 1
      %p125 = por %p123, %p124
      %p126 = scmp.ne.s32.totalorder %s117, %s118
      %p127 = scmp.eq.s32.totalorder %s23, 0
      %p128 = por %p126, %p127
      %p129 = scmp.ne.s32.totalorder %s117, %s118
      %p130 = scmp.eq.s32.totalorder %s24, 1
      %p131 = por %p129, %p130
      %p133 = scmp.ne.s32.totalorder %s118, %s132
      %p134 = scmp.eq.s32.totalorder %s24, 0
      %p135 = por %p133, %p134
      %s136 = ssub.s32 %s18, %s25
      %p137 = scmp.eq.s32.totalorder %s136, 0
      %s139 = sadd.s32 %s138, 1
      %s140 = scalar_select %p137, %s138, %s139
      %p143 = pneg %p137
      %p144 = scmp.eq.s32.totalorder %s18, 1
      %p145 = por %p143, %p144
      %p146 = scmp.ne.s32.totalorder %s138, %s141
      %p147 = scmp.eq.s32.totalorder %s18, 0
      %p148 = por %p146, %p147
      %p149 = scmp.ne.s32.totalorder %s138, %s141
      %p150 = scmp.eq.s32.totalorder %s23, 1
      %p151 = por %p149, %p150
      %p152 = scmp.ne.s32.totalorder %s141, %s142
      %p153 = scmp.eq.s32.totalorder %s23, 0
      %p154 = por %p152, %p153
      %p155 = scmp.ne.s32.totalorder %s141, %s142
      %p156 = scmp.eq.s32.totalorder %s24, 1
      %p157 = por %p155, %p156
      %p159 = scmp.ne.s32.totalorder %s142, %s158
      %p160 = scmp.eq.s32.totalorder %s24, 0
      %p161 = por %p159, %p160
      %p162 = scmp.le.s32.totalorder 1, %s18
      %p163 = scmp.lt.s32.totalorder %s18, 3
      %p164 = pnand %p162, %p163
      %p165 = pneg %p164
      // Predicated region
      $region9: #{pure_my_linear.1} parent=5 // pred_check
        _
      $region10: #{pure_my_linear.1} parent=5 // pred_check_branch
        %167 = sbr.rel (%p164) target = $region12
      $region11: #{pure_my_linear.1} parent=5 // pred_region
        %s168 = ssub.s32 %s18, 1
        // Predicated region
        $region13: #{pure_my_linear.1} parent=11 // pred_check
          %p169 = pneg %p65
        $region14: #{pure_my_linear.1} parent=11 // pred_check_branch
          %171 = sbr.rel (%p169) target = $region16
        $region15: #{pure_my_linear.1} parent=11 // pred_region
          %s173 = ssub.s32 12288, 12288
          %174 = vsyncadd [#allocation6], %s173
          %s175 = sshll.u32 [#allocation5], 4
          %s176 = int_to_ptr.vmem [resolvable:$true] %s175
          %181 = dma.hbm_to_vmem [thread:$0]  %s1, 12288, %s176, [#allocation6], 192, 192, 12
        $region16: #{pure_my_linear.1} parent=11 // pred_fallthru
          _
        // Predicated region
        $region17: #{pure_my_linear.1} parent=11 // pred_check
          %p182 = pneg %p86
        $region18: #{pure_my_linear.1} parent=11 // pred_check_branch
          %184 = sbr.rel (%p182) target = $region20
        $region19: #{pure_my_linear.1} parent=11 // pred_region
          _
        $region20: #{pure_my_linear.1} parent=11 // pred_fallthru
          _
        // Predicated region
        $region21: #{pure_my_linear.1} parent=11 // pred_check
          %p185 = pneg %p107
        $region22: #{pure_my_linear.1} parent=11 // pred_check_branch
          %187 = sbr.rel (%p185) target = $region24
        $region23: #{pure_my_linear.1} parent=11 // pred_region
          %s189 = ssub.s32 6144, 6144
          %190 = vsyncadd [#allocation6], %s189
          %s191 = sshll.u32 [#allocation7], 4
          %s192 = int_to_ptr.vmem [resolvable:$true] %s191
          %197 = dma.hbm_to_vmem [thread:$0]  %s3, 6144, %s192, [#allocation6], 128, 128, 8
        $region24: #{pure_my_linear.1} parent=11 // pred_fallthru
          _
        // Predicated region
        $region25: #{pure_my_linear.1} parent=11 // pred_check
          %p198 = pneg %p128
        $region26: #{pure_my_linear.1} parent=11 // pred_check_branch
          %200 = sbr.rel (%p198) target = $region28
        $region27: #{pure_my_linear.1} parent=11 // pred_region
          _
        $region28: #{pure_my_linear.1} parent=11 // pred_fallthru
          _
      $region12: #{pure_my_linear.1} parent=5 // pred_fallthru
        _
      %p201 = scmp.lt.s32.totalorder %s18, 2
      // Predicated region
      $region29: #{pure_my_linear.1} parent=5 // pred_check
        %p202 = pneg %p201
      $region30: #{pure_my_linear.1} parent=5 // pred_check_branch
        %204 = sbr.rel (%p202) target = $region32
      $region31: #{pure_my_linear.1} parent=5 // pred_region
        // Predicated region
        $region33: #{pure_my_linear.1} parent=31 // pred_check
          %p205 = pneg %p38
        $region34: #{pure_my_linear.1} parent=31 // pred_check_branch
          %207 = sbr.rel (%p205) target = $region36
        $region35: #{pure_my_linear.1} parent=31 // pred_region
          %s208 = sand.u32 %s28, 1
          %s209 = scalar_lea.sflag [#allocation3], %s208
          %s210 = sand.u32 %s28, 1
          %s211 = smul.addr %s210, 1024
          %s212 = scalar_lea.vmem [#allocation2], %s211
          %s213 = smul.u32 32, %s18
          %s215 = ssub.s32 16384, 16384
          %216 = vsyncadd %s209, %s215
          %s217 = smul.addr %s213, 4
          %s218 = smul.addr %s217, 128
          %s219 = scalar_lea.hbm %s0, %s218
          %s220 = sshll.u32 %s212, 4
          %s221 = int_to_ptr.vmem [resolvable:$true] %s220
          %226 = dma.hbm_to_vmem [thread:$0]  %s219, 16384, %s221, %s209, 512, 512, 32
        $region36: #{pure_my_linear.1} parent=31 // pred_fallthru
          _
      $region32: #{pure_my_linear.1} parent=5 // pred_fallthru
        _
      %p227 = scmp.le.s32.totalorder 1, %s18
      %p228 = scmp.lt.s32.totalorder %s18, 3
      %p229 = pnand %p227, %p228
      %p230 = pneg %p229
      // Predicated region
      $region37: #{pure_my_linear.1} parent=5 // pred_check
        _
      $region38: #{pure_my_linear.1} parent=5 // pred_check_branch
        %232 = sbr.rel (%p229) target = $region40
      $region39: #{pure_my_linear.1} parent=5 // pred_region
        %s233 = ssub.s32 %s18, 1
        %s234 = sand.u32 %s31, 1
        %s235 = scalar_lea.sflag [#allocation3], %s234
        %s236 = sand.u32 %s31, 1
        %s237 = smul.addr %s236, 1024
        %s238 = scalar_lea.vmem [#allocation2], %s237
        // Predicated region
        $region41: #{pure_my_linear.1} parent=39 // pred_check
          %p239 = pneg %p44
        $region42: #{pure_my_linear.1} parent=39 // pred_check_branch
          %241 = sbr.rel (%p239) target = $region44
        $region43: #{pure_my_linear.1} parent=39 // pred_region
          %242 = dma.done %s235, 16384
        $region44: #{pure_my_linear.1} parent=39 // pred_fallthru
          _
        // Predicated region
        $region45: #{pure_my_linear.1} parent=39 // pred_check
          %p243 = pneg %p65
        $region46: #{pure_my_linear.1} parent=39 // pred_check_branch
          %245 = sbr.rel (%p243) target = $region48
        $region47: #{pure_my_linear.1} parent=39 // pred_region
          %246 = dma.done [#allocation6], 12288
        $region48: #{pure_my_linear.1} parent=39 // pred_fallthru
          _
        // Predicated region
        $region49: #{pure_my_linear.1} parent=39 // pred_check
          %p247 = pneg %p107
        $region50: #{pure_my_linear.1} parent=39 // pred_check_branch
          %249 = sbr.rel (%p247) target = $region52
        $region51: #{pure_my_linear.1} parent=39 // pred_region
          %250 = dma.done [#allocation6], 6144
        $region52: #{pure_my_linear.1} parent=39 // pred_fallthru
          _
        %s251 = sand.u32 %s31, 1
        %s252 = scalar_lea.sflag [#allocation3], %s251
        %s253 = sand.u32 %s31, 1
        %s254 = smul.addr %s253, 1024
        %s255 = scalar_lea.vmem [#allocation2], %s254
        %p256 = pneg %p44
        %p257 = pneg %p41
        %p258 = pneg %p65
        %p259 = pneg %p62
        %p260 = pneg %p86
        %p261 = pneg %p83
        %p262 = pneg %p107
        %p263 = pneg %p104
        %p264 = pneg %p128
        %p265 = pneg %p125
        %p266 = pneg %p154
        %p267 = pneg %p151
        %s268 = sand.u32 %s141, 1
        %s269 = scalar_lea.sflag [#allocation4], %s268
        %s270 = sand.u32 %s141, 1
        %s271 = smul.addr %s270, 512
        %s272 = scalar_lea.vmem [#allocation8], %s271
        %s273 = smul.u32 32, %s23
        %s274 = smul.u32 32, %s23
        %v276 = vld [vmem:[%s238] sm:$0xff]
        %v277 = vld [vmem:[%s238 + $0x8] sm:$0xff]
        %v278 = vld [vmem:[%s238 + $0x10] sm:$0xff]
        %v279 = vld [vmem:[%s238 + $0x18] sm:$0xff]
        %v280 = vld [vmem:[%s238 + $0x20] sm:$0xff]
        %v281 = vld [vmem:[%s238 + $0x28] sm:$0xff]
        %v282 = vld [vmem:[%s238 + $0x30] sm:$0xff]
        %v283 = vld [vmem:[%s238 + $0x38] sm:$0xff]
        %v284 = vld [vmem:[%s238 + $0x40] sm:$0xff]
        %v285 = vld [vmem:[%s238 + $0x48] sm:$0xff]
        %v286 = vld [vmem:[%s238 + $0x50] sm:$0xff]
        %v287 = vld [vmem:[%s238 + $0x58] sm:$0xff]
        %v288 = vld [vmem:[%s238 + $0x60] sm:$0xff]
        %v289 = vld [vmem:[%s238 + $0x68] sm:$0xff]
        %v290 = vld [vmem:[%s238 + $0x70] sm:$0xff]
        %v291 = vld [vmem:[%s238 + $0x78] sm:$0xff]
        %v292 = vld [vmem:[%s238 + $0x80] sm:$0xff]
        %v293 = vld [vmem:[%s238 + $0x88] sm:$0xff]
        %v294 = vld [vmem:[%s238 + $0x90] sm:$0xff]
        %v295 = vld [vmem:[%s238 + $0x98] sm:$0xff]
        %v296 = vld [vmem:[%s238 + $0xa0] sm:$0xff]
        %v297 = vld [vmem:[%s238 + $0xa8] sm:$0xff]
        %v298 = vld [vmem:[%s238 + $0xb0] sm:$0xff]
        %v299 = vld [vmem:[%s238 + $0xb8] sm:$0xff]
        %v300 = vld [vmem:[%s238 + $0xc0] sm:$0xff]
        %v301 = vld [vmem:[%s238 + $0xc8] sm:$0xff]
        %v302 = vld [vmem:[%s238 + $0xd0] sm:$0xff]
        %v303 = vld [vmem:[%s238 + $0xd8] sm:$0xff]
        %v304 = vld [vmem:[%s238 + $0xe0] sm:$0xff]
        %v305 = vld [vmem:[%s238 + $0xe8] sm:$0xff]
        %v306 = vld [vmem:[%s238 + $0xf0] sm:$0xff]
        %v307 = vld [vmem:[%s238 + $0xf8] sm:$0xff]
        %v308 = vld [vmem:[%s238 + $0x100] sm:$0xff]
        %v309 = vld [vmem:[%s238 + $0x108] sm:$0xff]
        %v310 = vld [vmem:[%s238 + $0x110] sm:$0xff]
        %v311 = vld [vmem:[%s238 + $0x118] sm:$0xff]
        %v312 = vld [vmem:[%s238 + $0x120] sm:$0xff]
        %v313 = vld [vmem:[%s238 + $0x128] sm:$0xff]
        %v314 = vld [vmem:[%s238 + $0x130] sm:$0xff]
        %v315 = vld [vmem:[%s238 + $0x138] sm:$0xff]
        %v316 = vld [vmem:[%s238 + $0x140] sm:$0xff]
        %v317 = vld [vmem:[%s238 + $0x148] sm:$0xff]
        %v318 = vld [vmem:[%s238 + $0x150] sm:$0xff]
        %v319 = vld [vmem:[%s238 + $0x158] sm:$0xff]
        %v320 = vld [vmem:[%s238 + $0x160] sm:$0xff]
        %v321 = vld [vmem:[%s238 + $0x168] sm:$0xff]
        %v322 = vld [vmem:[%s238 + $0x170] sm:$0xff]
        %v323 = vld [vmem:[%s238 + $0x178] sm:$0xff]
        %v324 = vld [vmem:[%s238 + $0x180] sm:$0xff]
        %v325 = vld [vmem:[%s238 + $0x188] sm:$0xff]
        %v326 = vld [vmem:[%s238 + $0x190] sm:$0xff]
        %v327 = vld [vmem:[%s238 + $0x198] sm:$0xff]
        %v328 = vld [vmem:[%s238 + $0x1a0] sm:$0xff]
        %v329 = vld [vmem:[%s238 + $0x1a8] sm:$0xff]
        %v330 = vld [vmem:[%s238 + $0x1b0] sm:$0xff]
        %v331 = vld [vmem:[%s238 + $0x1b8] sm:$0xff]
        %v332 = vld [vmem:[%s238 + $0x1c0] sm:$0xff]
        %v333 = vld [vmem:[%s238 + $0x1c8] sm:$0xff]
        %v334 = vld [vmem:[%s238 + $0x1d0] sm:$0xff]
        %v335 = vld [vmem:[%s238 + $0x1d8] sm:$0xff]
        %v336 = vld [vmem:[%s238 + $0x1e0] sm:$0xff]
        %v337 = vld [vmem:[%s238 + $0x1e8] sm:$0xff]
        %v338 = vld [vmem:[%s238 + $0x1f0] sm:$0xff]
        %v339 = vld [vmem:[%s238 + $0x1f8] sm:$0xff]
        %v340 = vld [vmem:[%s238 + $0x200] sm:$0xff]
        %v341 = vld [vmem:[%s238 + $0x208] sm:$0xff]
        %v342 = vld [vmem:[%s238 + $0x210] sm:$0xff]
        %v343 = vld [vmem:[%s238 + $0x218] sm:$0xff]
        %v344 = vld [vmem:[%s238 + $0x220] sm:$0xff]
        %v345 = vld [vmem:[%s238 + $0x228] sm:$0xff]
        %v346 = vld [vmem:[%s238 + $0x230] sm:$0xff]
        %v347 = vld [vmem:[%s238 + $0x238] sm:$0xff]
        %v348 = vld [vmem:[%s238 + $0x240] sm:$0xff]
        %v349 = vld [vmem:[%s238 + $0x248] sm:$0xff]
        %v350 = vld [vmem:[%s238 + $0x250] sm:$0xff]
        %v351 = vld [vmem:[%s238 + $0x258] sm:$0xff]
        %v352 = vld [vmem:[%s238 + $0x260] sm:$0xff]
        %v353 = vld [vmem:[%s238 + $0x268] sm:$0xff]
        %v354 = vld [vmem:[%s238 + $0x270] sm:$0xff]
        %v355 = vld [vmem:[%s238 + $0x278] sm:$0xff]
        %v356 = vld [vmem:[%s238 + $0x280] sm:$0xff]
        %v357 = vld [vmem:[%s238 + $0x288] sm:$0xff]
        %v358 = vld [vmem:[%s238 + $0x290] sm:$0xff]
        %v359 = vld [vmem:[%s238 + $0x298] sm:$0xff]
        %v360 = vld [vmem:[%s238 + $0x2a0] sm:$0xff]
        %v361 = vld [vmem:[%s238 + $0x2a8] sm:$0xff]
        %v362 = vld [vmem:[%s238 + $0x2b0] sm:$0xff]
        %v363 = vld [vmem:[%s238 + $0x2b8] sm:$0xff]
        %v364 = vld [vmem:[%s238 + $0x2c0] sm:$0xff]
        %v365 = vld [vmem:[%s238 + $0x2c8] sm:$0xff]
        %v366 = vld [vmem:[%s238 + $0x2d0] sm:$0xff]
        %v367 = vld [vmem:[%s238 + $0x2d8] sm:$0xff]
        %v368 = vld [vmem:[%s238 + $0x2e0] sm:$0xff]
        %v369 = vld [vmem:[%s238 + $0x2e8] sm:$0xff]
        %v370 = vld [vmem:[%s238 + $0x2f0] sm:$0xff]
        %v371 = vld [vmem:[%s238 + $0x2f8] sm:$0xff]
        %v372 = vld [vmem:[%s238 + $0x300] sm:$0xff]
        %v373 = vld [vmem:[%s238 + $0x308] sm:$0xff]
        %v374 = vld [vmem:[%s238 + $0x310] sm:$0xff]
        %v375 = vld [vmem:[%s238 + $0x318] sm:$0xff]
        %v376 = vld [vmem:[%s238 + $0x320] sm:$0xff]
        %v377 = vld [vmem:[%s238 + $0x328] sm:$0xff]
        %v378 = vld [vmem:[%s238 + $0x330] sm:$0xff]
        %v379 = vld [vmem:[%s238 + $0x338] sm:$0xff]
        %v380 = vld [vmem:[%s238 + $0x340] sm:$0xff]
        %v381 = vld [vmem:[%s238 + $0x348] sm:$0xff]
        %v382 = vld [vmem:[%s238 + $0x350] sm:$0xff]
        %v383 = vld [vmem:[%s238 + $0x358] sm:$0xff]
        %v384 = vld [vmem:[%s238 + $0x360] sm:$0xff]
        %v385 = vld [vmem:[%s238 + $0x368] sm:$0xff]
        %v386 = vld [vmem:[%s238 + $0x370] sm:$0xff]
        %v387 = vld [vmem:[%s238 + $0x378] sm:$0xff]
        %v388 = vld [vmem:[%s238 + $0x380] sm:$0xff]
        %v389 = vld [vmem:[%s238 + $0x388] sm:$0xff]
        %v390 = vld [vmem:[%s238 + $0x390] sm:$0xff]
        %v391 = vld [vmem:[%s238 + $0x398] sm:$0xff]
        %v392 = vld [vmem:[%s238 + $0x3a0] sm:$0xff]
        %v393 = vld [vmem:[%s238 + $0x3a8] sm:$0xff]
        %v394 = vld [vmem:[%s238 + $0x3b0] sm:$0xff]
        %v395 = vld [vmem:[%s238 + $0x3b8] sm:$0xff]
        %v396 = vld [vmem:[%s238 + $0x3c0] sm:$0xff]
        %v397 = vld [vmem:[%s238 + $0x3c8] sm:$0xff]
        %v398 = vld [vmem:[%s238 + $0x3d0] sm:$0xff]
        %v399 = vld [vmem:[%s238 + $0x3d8] sm:$0xff]
        %v400 = vld [vmem:[%s238 + $0x3e0] sm:$0xff]
        %v401 = vld [vmem:[%s238 + $0x3e8] sm:$0xff]
        %v402 = vld [vmem:[%s238 + $0x3f0] sm:$0xff]
        %v403 = vld [vmem:[%s238 + $0x3f8] sm:$0xff]
        %v404 = vpack.c.bf16 %v280, %v276
        %v405 = vpack.c.bf16 %v281, %v277
        %v406 = vpack.c.bf16 %v282, %v278
        %v407 = vpack.c.bf16 %v283, %v279
        %v408 = vpack.c.bf16 %v288, %v284
        %v409 = vpack.c.bf16 %v289, %v285
        %v410 = vpack.c.bf16 %v290, %v286
        %v411 = vpack.c.bf16 %v291, %v287
        %v412 = vpack.c.bf16 %v296, %v292
        %v413 = vpack.c.bf16 %v297, %v293
        %v414 = vpack.c.bf16 %v298, %v294
        %v415 = vpack.c.bf16 %v299, %v295
        %v416 = vpack.c.bf16 %v304, %v300
        %v417 = vpack.c.bf16 %v305, %v301
        %v418 = vpack.c.bf16 %v306, %v302
        %v419 = vpack.c.bf16 %v307, %v303
        %v420 = vpack.c.bf16 %v312, %v308
        %v421 = vpack.c.bf16 %v313, %v309
        %v422 = vpack.c.bf16 %v314, %v310
        %v423 = vpack.c.bf16 %v315, %v311
        %v424 = vpack.c.bf16 %v320, %v316
        %v425 = vpack.c.bf16 %v321, %v317
        %v426 = vpack.c.bf16 %v322, %v318
        %v427 = vpack.c.bf16 %v323, %v319
        %v428 = vpack.c.bf16 %v328, %v324
        %v429 = vpack.c.bf16 %v329, %v325
        %v430 = vpack.c.bf16 %v330, %v326
        %v431 = vpack.c.bf16 %v331, %v327
        %v432 = vpack.c.bf16 %v336, %v332
        %v433 = vpack.c.bf16 %v337, %v333
        %v434 = vpack.c.bf16 %v338, %v334
        %v435 = vpack.c.bf16 %v339, %v335
        %v436 = vpack.c.bf16 %v344, %v340
        %v437 = vpack.c.bf16 %v345, %v341
        %v438 = vpack.c.bf16 %v346, %v342
        %v439 = vpack.c.bf16 %v347, %v343
        %v440 = vpack.c.bf16 %v352, %v348
        %v441 = vpack.c.bf16 %v353, %v349
        %v442 = vpack.c.bf16 %v354, %v350
        %v443 = vpack.c.bf16 %v355, %v351
        %v444 = vpack.c.bf16 %v360, %v356
        %v445 = vpack.c.bf16 %v361, %v357
        %v446 = vpack.c.bf16 %v362, %v358
        %v447 = vpack.c.bf16 %v363, %v359
        %v448 = vpack.c.bf16 %v368, %v364
        %v449 = vpack.c.bf16 %v369, %v365
        %v450 = vpack.c.bf16 %v370, %v366
        %v451 = vpack.c.bf16 %v371, %v367
        %v452 = vpack.c.bf16 %v376, %v372
        %v453 = vpack.c.bf16 %v377, %v373
        %v454 = vpack.c.bf16 %v378, %v374
        %v455 = vpack.c.bf16 %v379, %v375
        %v456 = vpack.c.bf16 %v384, %v380
        %v457 = vpack.c.bf16 %v385, %v381
        %v458 = vpack.c.bf16 %v386, %v382
        %v459 = vpack.c.bf16 %v387, %v383
        %v460 = vpack.c.bf16 %v392, %v388
        %v461 = vpack.c.bf16 %v393, %v389
        %v462 = vpack.c.bf16 %v394, %v390
        %v463 = vpack.c.bf16 %v395, %v391
        %v464 = vpack.c.bf16 %v400, %v396
        %v465 = vpack.c.bf16 %v401, %v397
        %v466 = vpack.c.bf16 %v402, %v398
        %v467 = vpack.c.bf16 %v403, %v399
        %v468 = vld [vmem:[#allocation5] sm:$0xff]
        %v469 = vld [vmem:[#allocation5 + $0x8] sm:$0xf]
        %v470 = vld [vmem:[#allocation5 + $0xc] sm:$0xff]
        %v471 = vld [vmem:[#allocation5 + $0x14] sm:$0xf]
        %v472 = vld [vmem:[#allocation5 + $0x18] sm:$0xff]
        %v473 = vld [vmem:[#allocation5 + $0x20] sm:$0xf]
        %v474 = vld [vmem:[#allocation5 + $0x24] sm:$0xff]
        %v475 = vld [vmem:[#allocation5 + $0x2c] sm:$0xf]
        %v476 = vld [vmem:[#allocation5 + $0x30] sm:$0xff]
        %v477 = vld [vmem:[#allocation5 + $0x38] sm:$0xf]
        %v478 = vld [vmem:[#allocation5 + $0x3c] sm:$0xff]
        %v479 = vld [vmem:[#allocation5 + $0x44] sm:$0xf]
        %v480 = vld [vmem:[#allocation5 + $0x48] sm:$0xff]
        %v481 = vld [vmem:[#allocation5 + $0x50] sm:$0xf]
        %v482 = vld [vmem:[#allocation5 + $0x54] sm:$0xff]
        %v483 = vld [vmem:[#allocation5 + $0x5c] sm:$0xf]
        %v484 = vld [vmem:[#allocation5 + $0x60] sm:$0xff]
        %v485 = vld [vmem:[#allocation5 + $0x68] sm:$0xf]
        %v486 = vld [vmem:[#allocation5 + $0x6c] sm:$0xff]
        %v487 = vld [vmem:[#allocation5 + $0x74] sm:$0xf]
        %v488 = vld [vmem:[#allocation5 + $0x78] sm:$0xff]
        %v489 = vld [vmem:[#allocation5 + $0x80] sm:$0xf]
        %v490 = vld [vmem:[#allocation5 + $0x84] sm:$0xff]
        %v491 = vld [vmem:[#allocation5 + $0x8c] sm:$0xf]
        %v492 = vld [vmem:[#allocation5 + $0x90] sm:$0xff]
        %v493 = vld [vmem:[#allocation5 + $0x98] sm:$0xf]
        %v494 = vld [vmem:[#allocation5 + $0x9c] sm:$0xff]
        %v495 = vld [vmem:[#allocation5 + $0xa4] sm:$0xf]
        %v496 = vld [vmem:[#allocation5 + $0xa8] sm:$0xff]
        %v497 = vld [vmem:[#allocation5 + $0xb0] sm:$0xf]
        %v498 = vld [vmem:[#allocation5 + $0xb4] sm:$0xff]
        %v499 = vld [vmem:[#allocation5 + $0xbc] sm:$0xf]
        %v500 = vld [vmem:[#allocation5 + $0xc0] sm:$0xff]
        %v501 = vld [vmem:[#allocation5 + $0xc8] sm:$0xf]
        %v502 = vld [vmem:[#allocation5 + $0xcc] sm:$0xff]
        %v503 = vld [vmem:[#allocation5 + $0xd4] sm:$0xf]
        %v504 = vld [vmem:[#allocation5 + $0xd8] sm:$0xff]
        %v505 = vld [vmem:[#allocation5 + $0xe0] sm:$0xf]
        %v506 = vld [vmem:[#allocation5 + $0xe4] sm:$0xff]
        %v507 = vld [vmem:[#allocation5 + $0xec] sm:$0xf]
        %v508 = vld [vmem:[#allocation5 + $0xf0] sm:$0xff]
        %v509 = vld [vmem:[#allocation5 + $0xf8] sm:$0xf]
        %v510 = vld [vmem:[#allocation5 + $0xfc] sm:$0xff]
        %v511 = vld [vmem:[#allocation5 + $0x104] sm:$0xf]
        %v512 = vld [vmem:[#allocation5 + $0x108] sm:$0xff]
        %v513 = vld [vmem:[#allocation5 + $0x110] sm:$0xf]
        %v514 = vld [vmem:[#allocation5 + $0x114] sm:$0xff]
        %v515 = vld [vmem:[#allocation5 + $0x11c] sm:$0xf]
        %v516 = vld [vmem:[#allocation5 + $0x120] sm:$0xff]
        %v517 = vld [vmem:[#allocation5 + $0x128] sm:$0xf]
        %v518 = vld [vmem:[#allocation5 + $0x12c] sm:$0xff]
        %v519 = vld [vmem:[#allocation5 + $0x134] sm:$0xf]
        %v520 = vld [vmem:[#allocation5 + $0x138] sm:$0xff]
        %v521 = vld [vmem:[#allocation5 + $0x140] sm:$0xf]
        %v522 = vld [vmem:[#allocation5 + $0x144] sm:$0xff]
        %v523 = vld [vmem:[#allocation5 + $0x14c] sm:$0xf]
        %v524 = vld [vmem:[#allocation5 + $0x150] sm:$0xff]
        %v525 = vld [vmem:[#allocation5 + $0x158] sm:$0xf]
        %v526 = vld [vmem:[#allocation5 + $0x15c] sm:$0xff]
        %v527 = vld [vmem:[#allocation5 + $0x164] sm:$0xf]
        %v528 = vld [vmem:[#allocation5 + $0x168] sm:$0xff]
        %v529 = vld [vmem:[#allocation5 + $0x170] sm:$0xf]
        %v530 = vld [vmem:[#allocation5 + $0x174] sm:$0xff]
        %v531 = vld [vmem:[#allocation5 + $0x17c] sm:$0xf]
        %v532 = vld [vmem:[#allocation5 + $0x180] sm:$0xff]
        %v533 = vld [vmem:[#allocation5 + $0x188] sm:$0xf]
        %v534 = vld [vmem:[#allocation5 + $0x18c] sm:$0xff]
        %v535 = vld [vmem:[#allocation5 + $0x194] sm:$0xf]
        %v536 = vld [vmem:[#allocation5 + $0x198] sm:$0xff]
        %v537 = vld [vmem:[#allocation5 + $0x1a0] sm:$0xf]
        %v538 = vld [vmem:[#allocation5 + $0x1a4] sm:$0xff]
        %v539 = vld [vmem:[#allocation5 + $0x1ac] sm:$0xf]
        %v540 = vld [vmem:[#allocation5 + $0x1b0] sm:$0xff]
        %v541 = vld [vmem:[#allocation5 + $0x1b8] sm:$0xf]
        %v542 = vld [vmem:[#allocation5 + $0x1bc] sm:$0xff]
        %v543 = vld [vmem:[#allocation5 + $0x1c4] sm:$0xf]
        %v544 = vld [vmem:[#allocation5 + $0x1c8] sm:$0xff]
        %v545 = vld [vmem:[#allocation5 + $0x1d0] sm:$0xf]
        %v546 = vld [vmem:[#allocation5 + $0x1d4] sm:$0xff]
        %v547 = vld [vmem:[#allocation5 + $0x1dc] sm:$0xf]
        %v548 = vld [vmem:[#allocation5 + $0x1e0] sm:$0xff]
        %v549 = vld [vmem:[#allocation5 + $0x1e8] sm:$0xf]
        %v550 = vld [vmem:[#allocation5 + $0x1ec] sm:$0xff]
        %v551 = vld [vmem:[#allocation5 + $0x1f4] sm:$0xf]
        %v552 = vld [vmem:[#allocation5 + $0x1f8] sm:$0xff]
        %v553 = vld [vmem:[#allocation5 + $0x200] sm:$0xf]
        %v554 = vld [vmem:[#allocation5 + $0x204] sm:$0xff]
        %v555 = vld [vmem:[#allocation5 + $0x20c] sm:$0xf]
        %v556 = vld [vmem:[#allocation5 + $0x210] sm:$0xff]
        %v557 = vld [vmem:[#allocation5 + $0x218] sm:$0xf]
        %v558 = vld [vmem:[#allocation5 + $0x21c] sm:$0xff]
        %v559 = vld [vmem:[#allocation5 + $0x224] sm:$0xf]
        %v560 = vld [vmem:[#allocation5 + $0x228] sm:$0xff]
        %v561 = vld [vmem:[#allocation5 + $0x230] sm:$0xf]
        %v562 = vld [vmem:[#allocation5 + $0x234] sm:$0xff]
        %v563 = vld [vmem:[#allocation5 + $0x23c] sm:$0xf]
        %v564 = vld [vmem:[#allocation5 + $0x240] sm:$0xff]
        %v565 = vld [vmem:[#allocation5 + $0x248] sm:$0xf]
        %v566 = vld [vmem:[#allocation5 + $0x24c] sm:$0xff]
        %v567 = vld [vmem:[#allocation5 + $0x254] sm:$0xf]
        %v568 = vld [vmem:[#allocation5 + $0x258] sm:$0xff]
        %v569 = vld [vmem:[#allocation5 + $0x260] sm:$0xf]
        %v570 = vld [vmem:[#allocation5 + $0x264] sm:$0xff]
        %v571 = vld [vmem:[#allocation5 + $0x26c] sm:$0xf]
        %v572 = vld [vmem:[#allocation5 + $0x270] sm:$0xff]
        %v573 = vld [vmem:[#allocation5 + $0x278] sm:$0xf]
        %v574 = vld [vmem:[#allocation5 + $0x27c] sm:$0xff]
        %v575 = vld [vmem:[#allocation5 + $0x284] sm:$0xf]
        %v576 = vld [vmem:[#allocation5 + $0x288] sm:$0xff]
        %v577 = vld [vmem:[#allocation5 + $0x290] sm:$0xf]
        %v578 = vld [vmem:[#allocation5 + $0x294] sm:$0xff]
        %v579 = vld [vmem:[#allocation5 + $0x29c] sm:$0xf]
        %v580 = vld [vmem:[#allocation5 + $0x2a0] sm:$0xff]
        %v581 = vld [vmem:[#allocation5 + $0x2a8] sm:$0xf]
        %v582 = vld [vmem:[#allocation5 + $0x2ac] sm:$0xff]
        %v583 = vld [vmem:[#allocation5 + $0x2b4] sm:$0xf]
        %v584 = vld [vmem:[#allocation5 + $0x2b8] sm:$0xff]
        %v585 = vld [vmem:[#allocation5 + $0x2c0] sm:$0xf]
        %v586 = vld [vmem:[#allocation5 + $0x2c4] sm:$0xff]
        %v587 = vld [vmem:[#allocation5 + $0x2cc] sm:$0xf]
        %v588 = vld [vmem:[#allocation5 + $0x2d0] sm:$0xff]
        %v589 = vld [vmem:[#allocation5 + $0x2d8] sm:$0xf]
        %v590 = vld [vmem:[#allocation5 + $0x2dc] sm:$0xff]
        %v591 = vld [vmem:[#allocation5 + $0x2e4] sm:$0xf]
        %v592 = vld [vmem:[#allocation5 + $0x2e8] sm:$0xff]
        %v593 = vld [vmem:[#allocation5 + $0x2f0] sm:$0xf]
        %v594 = vld [vmem:[#allocation5 + $0x2f4] sm:$0xff]
        %v595 = vld [vmem:[#allocation5 + $0x2fc] sm:$0xf]
        %v596 = vld [vmem:[%s2] sm:$0x7]
        %v598 = vlaneseq
        %v599 = vshrl.u32 %v598, 7
        %v600 = vsub.s32 0, %v599
        %v601 = vrot.slane %v596, %v600
        %v602 = vlaneseq
        %v603 = vshrl.u32 %v602, 7
        %v604 = vsub.s32 1, %v603
        %v605 = vrot.slane %v596, %v604
        %v606 = vlaneseq
        %v607 = vshrl.u32 %v606, 7
        %v608 = vsub.s32 2, %v607
        %v609 = vrot.slane %v596, %v608
        %v741 = vunpack.c.l.b16 %v468
        %v742 = vunpack.c.h.b16 %v468
        %v743 = vunpack.c.l.b16 %v469
        %v744 = vunpack.c.l.b16 %v470
        %v745 = vunpack.c.h.b16 %v470
        %v746 = vunpack.c.l.b16 %v471
        %v747 = vunpack.c.l.b16 %v472
        %v748 = vunpack.c.h.b16 %v472
        %v749 = vunpack.c.l.b16 %v473
        %v750 = vunpack.c.l.b16 %v474
        %v751 = vunpack.c.h.b16 %v474
        %v752 = vunpack.c.l.b16 %v475
        %v753 = vunpack.c.l.b16 %v476
        %v754 = vunpack.c.h.b16 %v476
        %v755 = vunpack.c.l.b16 %v477
        %v756 = vunpack.c.l.b16 %v478
        %v757 = vunpack.c.h.b16 %v478
        %v758 = vunpack.c.l.b16 %v479
        %v759 = vunpack.c.l.b16 %v480
        %v760 = vunpack.c.h.b16 %v480
        %v761 = vunpack.c.l.b16 %v481
        %v762 = vunpack.c.l.b16 %v482
        %v763 = vunpack.c.h.b16 %v482
        %v764 = vunpack.c.l.b16 %v483
        %v765 = vunpack.c.l.b16 %v484
        %v766 = vunpack.c.h.b16 %v484
        %v767 = vunpack.c.l.b16 %v485
        %v768 = vunpack.c.l.b16 %v486
        %v769 = vunpack.c.h.b16 %v486
        %v770 = vunpack.c.l.b16 %v487
        %v771 = vunpack.c.l.b16 %v488
        %v772 = vunpack.c.h.b16 %v488
        %v773 = vunpack.c.l.b16 %v489
        %v774 = vunpack.c.l.b16 %v490
        %v775 = vunpack.c.h.b16 %v490
        %v776 = vunpack.c.l.b16 %v491
        %v777 = vunpack.c.l.b16 %v492
        %v778 = vunpack.c.h.b16 %v492
        %v779 = vunpack.c.l.b16 %v493
        %v780 = vunpack.c.l.b16 %v494
        %v781 = vunpack.c.h.b16 %v494
        %v782 = vunpack.c.l.b16 %v495
        %v783 = vunpack.c.l.b16 %v496
        %v784 = vunpack.c.h.b16 %v496
        %v785 = vunpack.c.l.b16 %v497
        %v786 = vunpack.c.l.b16 %v498
        %v787 = vunpack.c.h.b16 %v498
        %v788 = vunpack.c.l.b16 %v499
        %v789 = vunpack.c.l.b16 %v500
        %v790 = vunpack.c.h.b16 %v500
        %v791 = vunpack.c.l.b16 %v501
        %v792 = vunpack.c.l.b16 %v502
        %v793 = vunpack.c.h.b16 %v502
        %v794 = vunpack.c.l.b16 %v503
        %v795 = vunpack.c.l.b16 %v504
        %v796 = vunpack.c.h.b16 %v504
        %v797 = vunpack.c.l.b16 %v505
        %v798 = vunpack.c.l.b16 %v506
        %v799 = vunpack.c.h.b16 %v506
        %v800 = vunpack.c.l.b16 %v507
        %v801 = vunpack.c.l.b16 %v508
        %v802 = vunpack.c.h.b16 %v508
        %v803 = vunpack.c.l.b16 %v509
        %v804 = vunpack.c.l.b16 %v510
        %v805 = vunpack.c.h.b16 %v510
        %v806 = vunpack.c.l.b16 %v511
        %v807 = vunpack.c.l.b16 %v512
        %v808 = vunpack.c.h.b16 %v512
        %v809 = vunpack.c.l.b16 %v513
        %v810 = vunpack.c.l.b16 %v514
        %v811 = vunpack.c.h.b16 %v514
        %v812 = vunpack.c.l.b16 %v515
        %v813 = vunpack.c.l.b16 %v516
        %v814 = vunpack.c.h.b16 %v516
        %v815 = vunpack.c.l.b16 %v517
        %v816 = vunpack.c.l.b16 %v518
        %v817 = vunpack.c.h.b16 %v518
        %v818 = vunpack.c.l.b16 %v519
        %v819 = vunpack.c.l.b16 %v520
        %v820 = vunpack.c.h.b16 %v520
        %v821 = vunpack.c.l.b16 %v521
        %v822 = vunpack.c.l.b16 %v522
        %v823 = vunpack.c.h.b16 %v522
        %v824 = vunpack.c.l.b16 %v523
        %v825 = vunpack.c.l.b16 %v524
        %v826 = vunpack.c.h.b16 %v524
        %v827 = vunpack.c.l.b16 %v525
        %v828 = vunpack.c.l.b16 %v526
        %v829 = vunpack.c.h.b16 %v526
        %v830 = vunpack.c.l.b16 %v527
        %v831 = vunpack.c.l.b16 %v528
        %v832 = vunpack.c.h.b16 %v528
        %v833 = vunpack.c.l.b16 %v529
        %v834 = vunpack.c.l.b16 %v530
        %v835 = vunpack.c.h.b16 %v530
        %v836 = vunpack.c.l.b16 %v531
        %v837 = vunpack.c.l.b16 %v532
        %v838 = vunpack.c.h.b16 %v532
        %v839 = vunpack.c.l.b16 %v533
        %v840 = vunpack.c.l.b16 %v534
        %v841 = vunpack.c.h.b16 %v534
        %v842 = vunpack.c.l.b16 %v535
        %v843 = vunpack.c.l.b16 %v536
        %v844 = vunpack.c.h.b16 %v536
        %v845 = vunpack.c.l.b16 %v537
        %v846 = vunpack.c.l.b16 %v538
        %v847 = vunpack.c.h.b16 %v538
        %v848 = vunpack.c.l.b16 %v539
        %v849 = vunpack.c.l.b16 %v540
        %v850 = vunpack.c.h.b16 %v540
        %v851 = vunpack.c.l.b16 %v541
        %v852 = vunpack.c.l.b16 %v542
        %v853 = vunpack.c.h.b16 %v542
        %v854 = vunpack.c.l.b16 %v543
        %v855 = vunpack.c.l.b16 %v544
        %v856 = vunpack.c.h.b16 %v544
        %v857 = vunpack.c.l.b16 %v545
        %v858 = vunpack.c.l.b16 %v546
        %v859 = vunpack.c.h.b16 %v546
        %v860 = vunpack.c.l.b16 %v547
        %v861 = vunpack.c.l.b16 %v548
        %v862 = vunpack.c.h.b16 %v548
        %v863 = vunpack.c.l.b16 %v549
        %v864 = vunpack.c.l.b16 %v550
        %v865 = vunpack.c.h.b16 %v550
        %v866 = vunpack.c.l.b16 %v551
        %v867 = vunpack.c.l.b16 %v552
        %v868 = vunpack.c.h.b16 %v552
        %v869 = vunpack.c.l.b16 %v553
        %v870 = vunpack.c.l.b16 %v554
        %v871 = vunpack.c.h.b16 %v554
        %v872 = vunpack.c.l.b16 %v555
        %v873 = vunpack.c.l.b16 %v556
        %v874 = vunpack.c.h.b16 %v556
        %v875 = vunpack.c.l.b16 %v557
        %v876 = vunpack.c.l.b16 %v558
        %v877 = vunpack.c.h.b16 %v558
        %v878 = vunpack.c.l.b16 %v559
        %v879 = vunpack.c.l.b16 %v560
        %v880 = vunpack.c.h.b16 %v560
        %v881 = vunpack.c.l.b16 %v561
        %v882 = vunpack.c.l.b16 %v562
        %v883 = vunpack.c.h.b16 %v562
        %v884 = vunpack.c.l.b16 %v563
        %v885 = vunpack.c.l.b16 %v564
        %v886 = vunpack.c.h.b16 %v564
        %v887 = vunpack.c.l.b16 %v565
        %v888 = vunpack.c.l.b16 %v566
        %v889 = vunpack.c.h.b16 %v566
        %v890 = vunpack.c.l.b16 %v567
        %v891 = vunpack.c.l.b16 %v568
        %v892 = vunpack.c.h.b16 %v568
        %v893 = vunpack.c.l.b16 %v569
        %v894 = vunpack.c.l.b16 %v570
        %v895 = vunpack.c.h.b16 %v570
        %v896 = vunpack.c.l.b16 %v571
        %v897 = vunpack.c.l.b16 %v572
        %v898 = vunpack.c.h.b16 %v572
        %v899 = vunpack.c.l.b16 %v573
        %v900 = vunpack.c.l.b16 %v574
        %v901 = vunpack.c.h.b16 %v574
        %v902 = vunpack.c.l.b16 %v575
        %v903 = vunpack.c.l.b16 %v576
        %v904 = vunpack.c.h.b16 %v576
        %v905 = vunpack.c.l.b16 %v577
        %v906 = vunpack.c.l.b16 %v578
        %v907 = vunpack.c.h.b16 %v578
        %v908 = vunpack.c.l.b16 %v579
        %v909 = vunpack.c.l.b16 %v580
        %v910 = vunpack.c.h.b16 %v580
        %v911 = vunpack.c.l.b16 %v581
        %v912 = vunpack.c.l.b16 %v582
        %v913 = vunpack.c.h.b16 %v582
        %v914 = vunpack.c.l.b16 %v583
        %v915 = vunpack.c.l.b16 %v584
        %v916 = vunpack.c.h.b16 %v584
        %v917 = vunpack.c.l.b16 %v585
        %v918 = vunpack.c.l.b16 %v586
        %v919 = vunpack.c.h.b16 %v586
        %v920 = vunpack.c.l.b16 %v587
        %v921 = vunpack.c.l.b16 %v588
        %v922 = vunpack.c.h.b16 %v588
        %v923 = vunpack.c.l.b16 %v589
        %v924 = vunpack.c.l.b16 %v590
        %v925 = vunpack.c.h.b16 %v590
        %v926 = vunpack.c.l.b16 %v591
        %v927 = vunpack.c.l.b16 %v592
        %v928 = vunpack.c.h.b16 %v592
        %v929 = vunpack.c.l.b16 %v593
        %v930 = vunpack.c.l.b16 %v594
        %v931 = vunpack.c.h.b16 %v594
        %v932 = vunpack.c.l.b16 %v595
        %v933 = vpack.c.b16 %v744, %v741
        %v934 = vpack.c.b16 %v745, %v742
        %v935 = vpack.c.b16 %v746, %v743
        %v936 = vpack.c.b16 %v750, %v747
        %v937 = vpack.c.b16 %v751, %v748
        %v938 = vpack.c.b16 %v752, %v749
        %v939 = vpack.c.b16 %v756, %v753
        %v940 = vpack.c.b16 %v757, %v754
        %v941 = vpack.c.b16 %v758, %v755
        %v942 = vpack.c.b16 %v762, %v759
        %v943 = vpack.c.b16 %v763, %v760
        %v944 = vpack.c.b16 %v764, %v761
        %v945 = vpack.c.b16 %v768, %v765
        %v946 = vpack.c.b16 %v769, %v766
        %v947 = vpack.c.b16 %v770, %v767
        %v948 = vpack.c.b16 %v774, %v771
        %v949 = vpack.c.b16 %v775, %v772
        %v950 = vpack.c.b16 %v776, %v773
        %v951 = vpack.c.b16 %v780, %v777
        %v952 = vpack.c.b16 %v781, %v778
        %v953 = vpack.c.b16 %v782, %v779
        %v954 = vpack.c.b16 %v786, %v783
        %v955 = vpack.c.b16 %v787, %v784
        %v956 = vpack.c.b16 %v788, %v785
        %v957 = vpack.c.b16 %v792, %v789
        %v958 = vpack.c.b16 %v793, %v790
        %v959 = vpack.c.b16 %v794, %v791
        %v960 = vpack.c.b16 %v798, %v795
        %v961 = vpack.c.b16 %v799, %v796
        %v962 = vpack.c.b16 %v800, %v797
        %v963 = vpack.c.b16 %v804, %v801
        %v964 = vpack.c.b16 %v805, %v802
        %v965 = vpack.c.b16 %v806, %v803
        %v966 = vpack.c.b16 %v810, %v807
        %v967 = vpack.c.b16 %v811, %v808
        %v968 = vpack.c.b16 %v812, %v809
        %v969 = vpack.c.b16 %v816, %v813
        %v970 = vpack.c.b16 %v817, %v814
        %v971 = vpack.c.b16 %v818, %v815
        %v972 = vpack.c.b16 %v822, %v819
        %v973 = vpack.c.b16 %v823, %v820
        %v974 = vpack.c.b16 %v824, %v821
        %v975 = vpack.c.b16 %v828, %v825
        %v976 = vpack.c.b16 %v829, %v826
        %v977 = vpack.c.b16 %v830, %v827
        %v978 = vpack.c.b16 %v834, %v831
        %v979 = vpack.c.b16 %v835, %v832
        %v980 = vpack.c.b16 %v836, %v833
        %v981 = vpack.c.b16 %v840, %v837
        %v982 = vpack.c.b16 %v841, %v838
        %v983 = vpack.c.b16 %v842, %v839
        %v984 = vpack.c.b16 %v846, %v843
        %v985 = vpack.c.b16 %v847, %v844
        %v986 = vpack.c.b16 %v848, %v845
        %v987 = vpack.c.b16 %v852, %v849
        %v988 = vpack.c.b16 %v853, %v850
        %v989 = vpack.c.b16 %v854, %v851
        %v990 = vpack.c.b16 %v858, %v855
        %v991 = vpack.c.b16 %v859, %v856
        %v992 = vpack.c.b16 %v860, %v857
        %v993 = vpack.c.b16 %v864, %v861
        %v994 = vpack.c.b16 %v865, %v862
        %v995 = vpack.c.b16 %v866, %v863
        %v996 = vpack.c.b16 %v870, %v867
        %v997 = vpack.c.b16 %v871, %v868
        %v998 = vpack.c.b16 %v872, %v869
        %v999 = vpack.c.b16 %v876, %v873
        %v1000 = vpack.c.b16 %v877, %v874
        %v1001 = vpack.c.b16 %v878, %v875
        %v1002 = vpack.c.b16 %v882, %v879
        %v1003 = vpack.c.b16 %v883, %v880
        %v1004 = vpack.c.b16 %v884, %v881
        %v1005 = vpack.c.b16 %v888, %v885
        %v1006 = vpack.c.b16 %v889, %v886
        %v1007 = vpack.c.b16 %v890, %v887
        %v1008 = vpack.c.b16 %v894, %v891
        %v1009 = vpack.c.b16 %v895, %v892
        %v1010 = vpack.c.b16 %v896, %v893
        %v1011 = vpack.c.b16 %v900, %v897
        %v1012 = vpack.c.b16 %v901, %v898
        %v1013 = vpack.c.b16 %v902, %v899
        %v1014 = vpack.c.b16 %v906, %v903
        %v1015 = vpack.c.b16 %v907, %v904
        %v1016 = vpack.c.b16 %v908, %v905
        %v1017 = vpack.c.b16 %v912, %v909
        %v1018 = vpack.c.b16 %v913, %v910
        %v1019 = vpack.c.b16 %v914, %v911
        %v1020 = vpack.c.b16 %v918, %v915
        %v1021 = vpack.c.b16 %v919, %v916
        %v1022 = vpack.c.b16 %v920, %v917
        %v1023 = vpack.c.b16 %v924, %v921
        %v1024 = vpack.c.b16 %v925, %v922
        %v1025 = vpack.c.b16 %v926, %v923
        %v1026 = vpack.c.b16 %v930, %v927
        %v1027 = vpack.c.b16 %v931, %v928
        %v1028 = vpack.c.b16 %v932, %v929
        %1125 = vmatprep.subr.bf16.mxu0 %v934
        %1126 = vmatpush1.bf16.msra.mxu0 %v933
        %1127 = vmatprep.subr.bf16.mxu0 %v937
        %1128 = vmatpush1.bf16.msra.mxu0 %v936
        %1129 = vmatprep.subr.bf16.mxu0 %v940
        %1130 = vmatpush1.bf16.msra.mxu0 %v939
        %1131 = vmatprep.subr.bf16.mxu0 %v943
        %1132 = vmatpush1.bf16.msra.mxu0 %v942
        %1133 = vmatprep.subr.bf16.mxu0 %v946
        %1134 = vmatpush1.bf16.msra.mxu0 %v945
        %1135 = vmatprep.subr.bf16.mxu0 %v949
        %1136 = vmatpush1.bf16.msra.mxu0 %v948
        %1137 = vmatprep.subr.bf16.mxu0 %v952
        %1138 = vmatpush1.bf16.msra.mxu0 %v951
        %1139 = vmatprep.subr.bf16.mxu0 %v955
        %1140 = vmatpush1.bf16.msra.mxu0 %v954
        %1141 = vmatprep.subr.bf16.mxu0 %v958
        %1142 = vmatpush1.bf16.msra.mxu0 %v957
        %1143 = vmatprep.subr.bf16.mxu0 %v961
        %1144 = vmatpush1.bf16.msra.mxu0 %v960
        %1145 = vmatprep.subr.bf16.mxu0 %v964
        %1146 = vmatpush1.bf16.msra.mxu0 %v963
        %1147 = vmatprep.subr.bf16.mxu0 %v967
        %1148 = vmatpush1.bf16.msra.mxu0 %v966
        %1149 = vmatprep.subr.bf16.mxu0 %v970
        %1150 = vmatpush1.bf16.msra.mxu0 %v969
        %1151 = vmatprep.subr.bf16.mxu0 %v973
        %1152 = vmatpush1.bf16.msra.mxu0 %v972
        %1153 = vmatprep.subr.bf16.mxu0 %v976
        %1154 = vmatpush1.bf16.msra.mxu0 %v975
        %1155 = vmatprep.subr.bf16.mxu0 %v979
        %1156 = vmatpush1.bf16.msra.mxu0 %v978
        %1157 = vmatprep.mubr.bf16.mxu0 %v405
        %1158 = vmatmul.mubr.bf16.gmra.mrb[0].mxu0 %v404
        %v1159 = vpop.f32.mrb[0].mxu0
        %v1160 = vadd.f32 %v601, %v1159
        %v1161 = vpop.f32.mrb[0].mxu0
        %v1162 = vadd.f32 %v605, %v1161
        %v1163 = vpop.f32.mrb[0].mxu0
        %v1164 = vadd.f32 %v601, %v1163
        %v1165 = vpop.f32.mrb[0].mxu0
        %v1166 = vadd.f32 %v605, %v1165
        %1167 = vmatprep.mubr.bf16.mxu0 %v409
        %1168 = vmatmul.mubr.bf16.gmra.mrb[0].mxu0 %v408
        %v1169 = vpop.f32.mrb[0].mxu0
        %v1170 = vadd.f32 %v601, %v1169
        %v1171 = vpop.f32.mrb[0].mxu0
        %v1172 = vadd.f32 %v605, %v1171
        %v1173 = vpop.f32.mrb[0].mxu0
        %v1174 = vadd.f32 %v601, %v1173
        %v1175 = vpop.f32.mrb[0].mxu0
        %v1176 = vadd.f32 %v605, %v1175
        %1177 = vmatprep.mubr.bf16.mxu0 %v413
        %1178 = vmatmul.mubr.bf16.gmra.mrb[0].mxu0 %v412
        %v1179 = vpop.f32.mrb[0].mxu0
        %v1180 = vadd.f32 %v601, %v1179
        %v1181 = vpop.f32.mrb[0].mxu0
        %v1182 = vadd.f32 %v605, %v1181
        %v1183 = vpop.f32.mrb[0].mxu0
        %v1184 = vadd.f32 %v601, %v1183
        %v1185 = vpop.f32.mrb[0].mxu0
        %v1186 = vadd.f32 %v605, %v1185
        %1187 = vmatprep.mubr.bf16.mxu0 %v417
        %1188 = vmatmul.mubr.bf16.gmra.mrb[0].mxu0 %v416
        %v1189 = vpop.f32.mrb[0].mxu0
        %v1190 = vadd.f32 %v601, %v1189
        %v1191 = vpop.f32.mrb[0].mxu0
        %v1192 = vadd.f32 %v605, %v1191
        %v1193 = vpop.f32.mrb[0].mxu0
        %v1194 = vadd.f32 %v601, %v1193
        %v1195 = vpop.f32.mrb[0].mxu0
        %v1196 = vadd.f32 %v605, %v1195
        %1197 = vmatprep.mubr.bf16.mxu0 %v421
        %1198 = vmatmul.mubr.bf16.gmra.mrb[0].mxu0 %v420
        %v1199 = vpop.f32.mrb[0].mxu0
        %v1200 = vadd.f32 %v601, %v1199
        %v1201 = vpop.f32.mrb[0].mxu0
        %v1202 = vadd.f32 %v605, %v1201
        %v1203 = vpop.f32.mrb[0].mxu0
        %v1204 = vadd.f32 %v601, %v1203
        %v1205 = vpop.f32.mrb[0].mxu0
        %v1206 = vadd.f32 %v605, %v1205
        %1207 = vmatprep.mubr.bf16.mxu0 %v425
        %1208 = vmatmul.mubr.bf16.gmra.mrb[0].mxu0 %v424
        %v1209 = vpop.f32.mrb[0].mxu0
        %v1210 = vadd.f32 %v601, %v1209
        %v1211 = vpop.f32.mrb[0].mxu0
        %v1212 = vadd.f32 %v605, %v1211
        %v1213 = vpop.f32.mrb[0].mxu0
        %v1214 = vadd.f32 %v601, %v1213
        %v1215 = vpop.f32.mrb[0].mxu0
        %v1216 = vadd.f32 %v605, %v1215
        %1217 = vmatprep.mubr.bf16.mxu0 %v429
        %1218 = vmatmul.mubr.bf16.gmra.mrb[0].mxu0 %v428
        %v1219 = vpop.f32.mrb[0].mxu0
        %v1220 = vadd.f32 %v601, %v1219
        %v1221 = vpop.f32.mrb[0].mxu0
        %v1222 = vadd.f32 %v605, %v1221
        %v1223 = vpop.f32.mrb[0].mxu0
        %v1224 = vadd.f32 %v601, %v1223
        %v1225 = vpop.f32.mrb[0].mxu0
        %v1226 = vadd.f32 %v605, %v1225
        %1227 = vmatprep.mubr.bf16.mxu0 %v433
        %1228 = vmatmul.mubr.bf16.gmra.mrb[0].mxu0 %v432
        %v1229 = vpop.f32.mrb[0].mxu0
        %v1230 = vadd.f32 %v601, %v1229
        %v1231 = vpop.f32.mrb[0].mxu0
        %v1232 = vadd.f32 %v605, %v1231
        %v1233 = vpop.f32.mrb[0].mxu0
        %v1234 = vadd.f32 %v601, %v1233
        %v1235 = vpop.f32.mrb[0].mxu0
        %v1236 = vadd.f32 %v605, %v1235
        %1237 = vmatprep.mubr.bf16.mxu0 %v437
        %1238 = vmatmul.mubr.bf16.gmra.mrb[0].mxu0 %v436
        %v1239 = vpop.f32.mrb[0].mxu0
        %v1240 = vadd.f32 %v601, %v1239
        %v1241 = vpop.f32.mrb[0].mxu0
        %v1242 = vadd.f32 %v605, %v1241
        %v1243 = vpop.f32.mrb[0].mxu0
        %v1244 = vadd.f32 %v601, %v1243
        %v1245 = vpop.f32.mrb[0].mxu0
        %v1246 = vadd.f32 %v605, %v1245
        %1247 = vmatprep.mubr.bf16.mxu0 %v441
        %1248 = vmatmul.mubr.bf16.gmra.mrb[0].mxu0 %v440
        %v1249 = vpop.f32.mrb[0].mxu0
        %v1250 = vadd.f32 %v601, %v1249
        %v1251 = vpop.f32.mrb[0].mxu0
        %v1252 = vadd.f32 %v605, %v1251
        %v1253 = vpop.f32.mrb[0].mxu0
        %v1254 = vadd.f32 %v601, %v1253
        %v1255 = vpop.f32.mrb[0].mxu0
        %v1256 = vadd.f32 %v605, %v1255
        %1257 = vmatprep.mubr.bf16.mxu0 %v445
        %1258 = vmatmul.mubr.bf16.gmra.mrb[0].mxu0 %v444
        %v1259 = vpop.f32.mrb[0].mxu0
        %v1260 = vadd.f32 %v601, %v1259
        %v1261 = vpop.f32.mrb[0].mxu0
        %v1262 = vadd.f32 %v605, %v1261
        %v1263 = vpop.f32.mrb[0].mxu0
        %v1264 = vadd.f32 %v601, %v1263
        %v1265 = vpop.f32.mrb[0].mxu0
        %v1266 = vadd.f32 %v605, %v1265
        %1267 = vmatprep.mubr.bf16.mxu0 %v449
        %1268 = vmatmul.mubr.bf16.gmra.mrb[0].mxu0 %v448
        %v1269 = vpop.f32.mrb[0].mxu0
        %v1270 = vadd.f32 %v601, %v1269
        %v1271 = vpop.f32.mrb[0].mxu0
        %v1272 = vadd.f32 %v605, %v1271
        %v1273 = vpop.f32.mrb[0].mxu0
        %v1274 = vadd.f32 %v601, %v1273
        %v1275 = vpop.f32.mrb[0].mxu0
        %v1276 = vadd.f32 %v605, %v1275
        %1277 = vmatprep.mubr.bf16.mxu0 %v453
        %1278 = vmatmul.mubr.bf16.gmra.mrb[0].mxu0 %v452
        %v1279 = vpop.f32.mrb[0].mxu0
        %v1280 = vadd.f32 %v601, %v1279
        %v1281 = vpop.f32.mrb[0].mxu0
        %v1282 = vadd.f32 %v605, %v1281
        %v1283 = vpop.f32.mrb[0].mxu0
        %v1284 = vadd.f32 %v601, %v1283
        %v1285 = vpop.f32.mrb[0].mxu0
        %v1286 = vadd.f32 %v605, %v1285
        %1287 = vmatprep.mubr.bf16.mxu0 %v457
        %1288 = vmatmul.mubr.bf16.gmra.mrb[0].mxu0 %v456
        %v1289 = vpop.f32.mrb[0].mxu0
        %v1290 = vadd.f32 %v601, %v1289
        %v1291 = vpop.f32.mrb[0].mxu0
        %v1292 = vadd.f32 %v605, %v1291
        %v1293 = vpop.f32.mrb[0].mxu0
        %v1294 = vadd.f32 %v601, %v1293
        %v1295 = vpop.f32.mrb[0].mxu0
        %v1296 = vadd.f32 %v605, %v1295
        %1297 = vmatprep.mubr.bf16.mxu0 %v461
        %1298 = vmatmul.mubr.bf16.gmra.mrb[0].mxu0 %v460
        %v1299 = vpop.f32.mrb[0].mxu0
        %v1300 = vadd.f32 %v601, %v1299
        %v1301 = vpop.f32.mrb[0].mxu0
        %v1302 = vadd.f32 %v605, %v1301
        %v1303 = vpop.f32.mrb[0].mxu0
        %v1304 = vadd.f32 %v601, %v1303
        %v1305 = vpop.f32.mrb[0].mxu0
        %v1306 = vadd.f32 %v605, %v1305
        %1307 = vmatprep.mubr.bf16.mxu0 %v465
        %1308 = vmatmul.mubr.bf16.gmra.mrb[0].mxu0 %v464
        %v1309 = vpop.f32.mrb[0].mxu0
        %v1310 = vadd.f32 %v601, %v1309
        %v1311 = vpop.f32.mrb[0].mxu0
        %v1312 = vadd.f32 %v605, %v1311
        %v1313 = vpop.f32.mrb[0].mxu0
        %v1314 = vadd.f32 %v601, %v1313
        %v1315 = vpop.f32.mrb[0].mxu0
        %v1316 = vadd.f32 %v605, %v1315
        %1317 = vdwg.mxu0
        %1318 = vmatprep.subr.bf16.mxu0 %v982
        %1319 = vmatpush1.bf16.msra.mxu0 %v981
        %1320 = vmatprep.subr.bf16.mxu0 %v985
        %1321 = vmatpush1.bf16.msra.mxu0 %v984
        %1322 = vmatprep.subr.bf16.mxu0 %v988
        %1323 = vmatpush1.bf16.msra.mxu0 %v987
        %1324 = vmatprep.subr.bf16.mxu0 %v991
        %1325 = vmatpush1.bf16.msra.mxu0 %v990
        %1326 = vmatprep.subr.bf16.mxu0 %v994
        %1327 = vmatpush1.bf16.msra.mxu0 %v993
        %1328 = vmatprep.subr.bf16.mxu0 %v997
        %1329 = vmatpush1.bf16.msra.mxu0 %v996
        %1330 = vmatprep.subr.bf16.mxu0 %v1000
        %1331 = vmatpush1.bf16.msra.mxu0 %v999
        %1332 = vmatprep.subr.bf16.mxu0 %v1003
        %1333 = vmatpush1.bf16.msra.mxu0 %v1002
        %1334 = vmatprep.subr.bf16.mxu0 %v1006
        %1335 = vmatpush1.bf16.msra.mxu0 %v1005
        %1336 = vmatprep.subr.bf16.mxu0 %v1009
        %1337 = vmatpush1.bf16.msra.mxu0 %v1008
        %1338 = vmatprep.subr.bf16.mxu0 %v1012
        %1339 = vmatpush1.bf16.msra.mxu0 %v1011
        %1340 = vmatprep.subr.bf16.mxu0 %v1015
        %1341 = vmatpush1.bf16.msra.mxu0 %v1014
        %1342 = vmatprep.subr.bf16.mxu0 %v1018
        %1343 = vmatpush1.bf16.msra.mxu0 %v1017
        %1344 = vmatprep.subr.bf16.mxu0 %v1021
        %1345 = vmatpush1.bf16.msra.mxu0 %v1020
        %1346 = vmatprep.subr.bf16.mxu0 %v1024
        %1347 = vmatpush1.bf16.msra.mxu0 %v1023
        %1348 = vmatprep.subr.bf16.mxu0 %v1027
        %1349 = vmatpush1.bf16.msra.mxu0 %v1026
        %1350 = vmatprep.mubr.bf16.mxu0 %v407
        %1351 = vmatmul.mubr.bf16.gmra.mrb[0].mxu0 %v406
        %v1352 = vpop.f32.mrb[0].mxu0
        %v1353 = vadd.f32 %v1160, %v1352
        %v1354 = vpop.f32.mrb[0].mxu0
        %v1355 = vadd.f32 %v1162, %v1354
        %v1356 = vpop.f32.mrb[0].mxu0
        %v1357 = vadd.f32 %v1164, %v1356
        %v1358 = vpop.f32.mrb[0].mxu0
        %v1359 = vadd.f32 %v1166, %v1358
        %1360 = vmatprep.mubr.bf16.mxu0 %v411
        %1361 = vmatmul.mubr.bf16.gmra.mrb[0].mxu0 %v410
        %v1362 = vpop.f32.mrb[0].mxu0
        %v1363 = vadd.f32 %v1170, %v1362
        %v1364 = vpop.f32.mrb[0].mxu0
        %v1365 = vadd.f32 %v1172, %v1364
        %v1366 = vpop.f32.mrb[0].mxu0
        %v1367 = vadd.f32 %v1174, %v1366
        %v1368 = vpop.f32.mrb[0].mxu0
        %v1369 = vadd.f32 %v1176, %v1368
        %1370 = vmatprep.mubr.bf16.mxu0 %v415
        %1371 = vmatmul.mubr.bf16.gmra.mrb[0].mxu0 %v414
        %v1372 = vpop.f32.mrb[0].mxu0
        %v1373 = vadd.f32 %v1180, %v1372
        %v1374 = vpop.f32.mrb[0].mxu0
        %v1375 = vadd.f32 %v1182, %v1374
        %v1376 = vpop.f32.mrb[0].mxu0
        %v1377 = vadd.f32 %v1184, %v1376
        %v1378 = vpop.f32.mrb[0].mxu0
        %v1379 = vadd.f32 %v1186, %v1378
        %1380 = vmatprep.mubr.bf16.mxu0 %v419
        %1381 = vmatmul.mubr.bf16.gmra.mrb[0].mxu0 %v418
        %v1382 = vpop.f32.mrb[0].mxu0
        %v1383 = vadd.f32 %v1190, %v1382
        %v1384 = vpop.f32.mrb[0].mxu0
        %v1385 = vadd.f32 %v1192, %v1384
        %v1386 = vpop.f32.mrb[0].mxu0
        %v1387 = vadd.f32 %v1194, %v1386
        %v1388 = vpop.f32.mrb[0].mxu0
        %v1389 = vadd.f32 %v1196, %v1388
        %1390 = vmatprep.mubr.bf16.mxu0 %v423
        %1391 = vmatmul.mubr.bf16.gmra.mrb[0].mxu0 %v422
        %v1392 = vpop.f32.mrb[0].mxu0
        %v1393 = vadd.f32 %v1200, %v1392
        %v1394 = vpop.f32.mrb[0].mxu0
        %v1395 = vadd.f32 %v1202, %v1394
        %v1396 = vpop.f32.mrb[0].mxu0
        %v1397 = vadd.f32 %v1204, %v1396
        %v1398 = vpop.f32.mrb[0].mxu0
        %v1399 = vadd.f32 %v1206, %v1398
        %1400 = vmatprep.mubr.bf16.mxu0 %v427
        %1401 = vmatmul.mubr.bf16.gmra.mrb[0].mxu0 %v426
        %v1402 = vpop.f32.mrb[0].mxu0
        %v1403 = vadd.f32 %v1210, %v1402
        %v1404 = vpop.f32.mrb[0].mxu0
        %v1405 = vadd.f32 %v1212, %v1404
        %v1406 = vpop.f32.mrb[0].mxu0
        %v1407 = vadd.f32 %v1214, %v1406
        %v1408 = vpop.f32.mrb[0].mxu0
        %v1409 = vadd.f32 %v1216, %v1408
        %1410 = vmatprep.mubr.bf16.mxu0 %v431
        %1411 = vmatmul.mubr.bf16.gmra.mrb[0].mxu0 %v430
        %v1412 = vpop.f32.mrb[0].mxu0
        %v1413 = vadd.f32 %v1220, %v1412
        %v1414 = vpop.f32.mrb[0].mxu0
        %v1415 = vadd.f32 %v1222, %v1414
        %v1416 = vpop.f32.mrb[0].mxu0
        %v1417 = vadd.f32 %v1224, %v1416
        %v1418 = vpop.f32.mrb[0].mxu0
        %v1419 = vadd.f32 %v1226, %v1418
        %1420 = vmatprep.mubr.bf16.mxu0 %v435
        %1421 = vmatmul.mubr.bf16.gmra.mrb[0].mxu0 %v434
        %v1422 = vpop.f32.mrb[0].mxu0
        %v1423 = vadd.f32 %v1230, %v1422
        %v1424 = vpop.f32.mrb[0].mxu0
        %v1425 = vadd.f32 %v1232, %v1424
        %v1426 = vpop.f32.mrb[0].mxu0
        %v1427 = vadd.f32 %v1234, %v1426
        %v1428 = vpop.f32.mrb[0].mxu0
        %v1429 = vadd.f32 %v1236, %v1428
        %1430 = vmatprep.mubr.bf16.mxu0 %v439
        %1431 = vmatmul.mubr.bf16.gmra.mrb[0].mxu0 %v438
        %v1432 = vpop.f32.mrb[0].mxu0
        %v1433 = vadd.f32 %v1240, %v1432
        %v1434 = vpop.f32.mrb[0].mxu0
        %v1435 = vadd.f32 %v1242, %v1434
        %v1436 = vpop.f32.mrb[0].mxu0
        %v1437 = vadd.f32 %v1244, %v1436
        %v1438 = vpop.f32.mrb[0].mxu0
        %v1439 = vadd.f32 %v1246, %v1438
        %1440 = vmatprep.mubr.bf16.mxu0 %v443
        %1441 = vmatmul.mubr.bf16.gmra.mrb[0].mxu0 %v442
        %v1442 = vpop.f32.mrb[0].mxu0
        %v1443 = vadd.f32 %v1250, %v1442
        %v1444 = vpop.f32.mrb[0].mxu0
        %v1445 = vadd.f32 %v1252, %v1444
        %v1446 = vpop.f32.mrb[0].mxu0
        %v1447 = vadd.f32 %v1254, %v1446
        %v1448 = vpop.f32.mrb[0].mxu0
        %v1449 = vadd.f32 %v1256, %v1448
        %1450 = vmatprep.mubr.bf16.mxu0 %v447
        %1451 = vmatmul.mubr.bf16.gmra.mrb[0].mxu0 %v446
        %v1452 = vpop.f32.mrb[0].mxu0
        %v1453 = vadd.f32 %v1260, %v1452
        %v1454 = vpop.f32.mrb[0].mxu0
        %v1455 = vadd.f32 %v1262, %v1454
        %v1456 = vpop.f32.mrb[0].mxu0
        %v1457 = vadd.f32 %v1264, %v1456
        %v1458 = vpop.f32.mrb[0].mxu0
        %v1459 = vadd.f32 %v1266, %v1458
        %1460 = vmatprep.mubr.bf16.mxu0 %v451
        %1461 = vmatmul.mubr.bf16.gmra.mrb[0].mxu0 %v450
        %v1462 = vpop.f32.mrb[0].mxu0
        %v1463 = vadd.f32 %v1270, %v1462
        %v1464 = vpop.f32.mrb[0].mxu0
        %v1465 = vadd.f32 %v1272, %v1464
        %v1466 = vpop.f32.mrb[0].mxu0
        %v1467 = vadd.f32 %v1274, %v1466
        %v1468 = vpop.f32.mrb[0].mxu0
        %v1469 = vadd.f32 %v1276, %v1468
        %1470 = vmatprep.mubr.bf16.mxu0 %v455
        %1471 = vmatmul.mubr.bf16.gmra.mrb[0].mxu0 %v454
        %v1472 = vpop.f32.mrb[0].mxu0
        %v1473 = vadd.f32 %v1280, %v1472
        %v1474 = vpop.f32.mrb[0].mxu0
        %v1475 = vadd.f32 %v1282, %v1474
        %v1476 = vpop.f32.mrb[0].mxu0
        %v1477 = vadd.f32 %v1284, %v1476
        %v1478 = vpop.f32.mrb[0].mxu0
        %v1479 = vadd.f32 %v1286, %v1478
        %1480 = vmatprep.mubr.bf16.mxu0 %v459
        %1481 = vmatmul.mubr.bf16.gmra.mrb[0].mxu0 %v458
        %v1482 = vpop.f32.mrb[0].mxu0
        %v1483 = vadd.f32 %v1290, %v1482
        %v1484 = vpop.f32.mrb[0].mxu0
        %v1485 = vadd.f32 %v1292, %v1484
        %v1486 = vpop.f32.mrb[0].mxu0
        %v1487 = vadd.f32 %v1294, %v1486
        %v1488 = vpop.f32.mrb[0].mxu0
        %v1489 = vadd.f32 %v1296, %v1488
        %1490 = vmatprep.mubr.bf16.mxu0 %v463
        %1491 = vmatmul.mubr.bf16.gmra.mrb[0].mxu0 %v462
        %v1492 = vpop.f32.mrb[0].mxu0
        %v1493 = vadd.f32 %v1300, %v1492
        %v1494 = vpop.f32.mrb[0].mxu0
        %v1495 = vadd.f32 %v1302, %v1494
        %v1496 = vpop.f32.mrb[0].mxu0
        %v1497 = vadd.f32 %v1304, %v1496
        %v1498 = vpop.f32.mrb[0].mxu0
        %v1499 = vadd.f32 %v1306, %v1498
        %1500 = vmatprep.mubr.bf16.mxu0 %v467
        %1501 = vmatmul.mubr.bf16.gmra.mrb[0].mxu0 %v466
        %v1502 = vpop.f32.mrb[0].mxu0
        %v1503 = vadd.f32 %v1310, %v1502
        %v1504 = vpop.f32.mrb[0].mxu0
        %v1505 = vadd.f32 %v1312, %v1504
        %v1506 = vpop.f32.mrb[0].mxu0
        %v1507 = vadd.f32 %v1314, %v1506
        %v1508 = vpop.f32.mrb[0].mxu0
        %v1509 = vadd.f32 %v1316, %v1508
        %1510 = vdwg.mxu0
        %1511 = vmatprep.subr.bf16.mxu0 0
        %1512 = vmatpush1.bf16.msra.mxu0 %v935
        %1513 = vmatprep.subr.bf16.mxu0 0
        %1514 = vmatpush1.bf16.msra.mxu0 %v938
        %1515 = vmatprep.subr.bf16.mxu0 0
        %1516 = vmatpush1.bf16.msra.mxu0 %v941
        %1517 = vmatprep.subr.bf16.mxu0 0
        %1518 = vmatpush1.bf16.msra.mxu0 %v944
        %1519 = vmatprep.subr.bf16.mxu0 0
        %1520 = vmatpush1.bf16.msra.mxu0 %v947
        %1521 = vmatprep.subr.bf16.mxu0 0
        %1522 = vmatpush1.bf16.msra.mxu0 %v950
        %1523 = vmatprep.subr.bf16.mxu0 0
        %1524 = vmatpush1.bf16.msra.mxu0 %v953
        %1525 = vmatprep.subr.bf16.mxu0 0
        %1526 = vmatpush1.bf16.msra.mxu0 %v956
        %1527 = vmatprep.subr.bf16.mxu0 0
        %1528 = vmatpush1.bf16.msra.mxu0 %v959
        %1529 = vmatprep.subr.bf16.mxu0 0
        %1530 = vmatpush1.bf16.msra.mxu0 %v962
        %1531 = vmatprep.subr.bf16.mxu0 0
        %1532 = vmatpush1.bf16.msra.mxu0 %v965
        %1533 = vmatprep.subr.bf16.mxu0 0
        %1534 = vmatpush1.bf16.msra.mxu0 %v968
        %1535 = vmatprep.subr.bf16.mxu0 0
        %1536 = vmatpush1.bf16.msra.mxu0 %v971
        %1537 = vmatprep.subr.bf16.mxu0 0
        %1538 = vmatpush1.bf16.msra.mxu0 %v974
        %1539 = vmatprep.subr.bf16.mxu0 0
        %1540 = vmatpush1.bf16.msra.mxu0 %v977
        %1541 = vmatprep.subr.bf16.mxu0 0
        %1542 = vmatpush1.bf16.msra.mxu0 %v980
        %1543 = vmatprep.mubr.bf16.mxu0 %v405
        %1544 = vmatmul.mubr.bf16.gmra.mrb[0].mxu0 %v404
        %v1545 = vpop.f32.mrb[0].mxu0
        %v1546 = vadd.f32 %v609, %v1545
        %v1547 = vpop.f32.mrb[0].mxu0
        %v1548 = vpop.f32.mrb[0].mxu0
        %v1549 = vadd.f32 %v609, %v1548
        %v1550 = vpop.f32.mrb[0].mxu0
        %1551 = vmatprep.mubr.bf16.mxu0 %v409
        %1552 = vmatmul.mubr.bf16.gmra.mrb[0].mxu0 %v408
        %v1553 = vpop.f32.mrb[0].mxu0
        %v1554 = vadd.f32 %v609, %v1553
        %v1555 = vpop.f32.mrb[0].mxu0
        %v1556 = vpop.f32.mrb[0].mxu0
        %v1557 = vadd.f32 %v609, %v1556
        %v1558 = vpop.f32.mrb[0].mxu0
        %1559 = vmatprep.mubr.bf16.mxu0 %v413
        %1560 = vmatmul.mubr.bf16.gmra.mrb[0].mxu0 %v412
        %v1561 = vpop.f32.mrb[0].mxu0
        %v1562 = vadd.f32 %v609, %v1561
        %v1563 = vpop.f32.mrb[0].mxu0
        %v1564 = vpop.f32.mrb[0].mxu0
        %v1565 = vadd.f32 %v609, %v1564
        %v1566 = vpop.f32.mrb[0].mxu0
        %1567 = vmatprep.mubr.bf16.mxu0 %v417
        %1568 = vmatmul.mubr.bf16.gmra.mrb[0].mxu0 %v416
        %v1569 = vpop.f32.mrb[0].mxu0
        %v1570 = vadd.f32 %v609, %v1569
        %v1571 = vpop.f32.mrb[0].mxu0
        %v1572 = vpop.f32.mrb[0].mxu0
        %v1573 = vadd.f32 %v609, %v1572
        %v1574 = vpop.f32.mrb[0].mxu0
        %1575 = vmatprep.mubr.bf16.mxu0 %v421
        %1576 = vmatmul.mubr.bf16.gmra.mrb[0].mxu0 %v420
        %v1577 = vpop.f32.mrb[0].mxu0
        %v1578 = vadd.f32 %v609, %v1577
        %v1579 = vpop.f32.mrb[0].mxu0
        %v1580 = vpop.f32.mrb[0].mxu0
        %v1581 = vadd.f32 %v609, %v1580
        %v1582 = vpop.f32.mrb[0].mxu0
        %1583 = vmatprep.mubr.bf16.mxu0 %v425
        %1584 = vmatmul.mubr.bf16.gmra.mrb[0].mxu0 %v424
        %v1585 = vpop.f32.mrb[0].mxu0
        %v1586 = vadd.f32 %v609, %v1585
        %v1587 = vpop.f32.mrb[0].mxu0
        %v1588 = vpop.f32.mrb[0].mxu0
        %v1589 = vadd.f32 %v609, %v1588
        %v1590 = vpop.f32.mrb[0].mxu0
        %1591 = vmatprep.mubr.bf16.mxu0 %v429
        %1592 = vmatmul.mubr.bf16.gmra.mrb[0].mxu0 %v428
        %v1593 = vpop.f32.mrb[0].mxu0
        %v1594 = vadd.f32 %v609, %v1593
        %v1595 = vpop.f32.mrb[0].mxu0
        %v1596 = vpop.f32.mrb[0].mxu0
        %v1597 = vadd.f32 %v609, %v1596
        %v1598 = vpop.f32.mrb[0].mxu0
        %1599 = vmatprep.mubr.bf16.mxu0 %v433
        %1600 = vmatmul.mubr.bf16.gmra.mrb[0].mxu0 %v432
        %v1601 = vpop.f32.mrb[0].mxu0
        %v1602 = vadd.f32 %v609, %v1601
        %v1603 = vpop.f32.mrb[0].mxu0
        %v1604 = vpop.f32.mrb[0].mxu0
        %v1605 = vadd.f32 %v609, %v1604
        %v1606 = vpop.f32.mrb[0].mxu0
        %1607 = vmatprep.mubr.bf16.mxu0 %v437
        %1608 = vmatmul.mubr.bf16.gmra.mrb[0].mxu0 %v436
        %v1609 = vpop.f32.mrb[0].mxu0
        %v1610 = vadd.f32 %v609, %v1609
        %v1611 = vpop.f32.mrb[0].mxu0
        %v1612 = vpop.f32.mrb[0].mxu0
        %v1613 = vadd.f32 %v609, %v1612
        %v1614 = vpop.f32.mrb[0].mxu0
        %1615 = vmatprep.mubr.bf16.mxu0 %v441
        %1616 = vmatmul.mubr.bf16.gmra.mrb[0].mxu0 %v440
        %v1617 = vpop.f32.mrb[0].mxu0
        %v1618 = vadd.f32 %v609, %v1617
        %v1619 = vpop.f32.mrb[0].mxu0
        %v1620 = vpop.f32.mrb[0].mxu0
        %v1621 = vadd.f32 %v609, %v1620
        %v1622 = vpop.f32.mrb[0].mxu0
        %1623 = vmatprep.mubr.bf16.mxu0 %v445
        %1624 = vmatmul.mubr.bf16.gmra.mrb[0].mxu0 %v444
        %v1625 = vpop.f32.mrb[0].mxu0
        %v1626 = vadd.f32 %v609, %v1625
        %v1627 = vpop.f32.mrb[0].mxu0
        %v1628 = vpop.f32.mrb[0].mxu0
        %v1629 = vadd.f32 %v609, %v1628
        %v1630 = vpop.f32.mrb[0].mxu0
        %1631 = vmatprep.mubr.bf16.mxu0 %v449
        %1632 = vmatmul.mubr.bf16.gmra.mrb[0].mxu0 %v448
        %v1633 = vpop.f32.mrb[0].mxu0
        %v1634 = vadd.f32 %v609, %v1633
        %v1635 = vpop.f32.mrb[0].mxu0
        %v1636 = vpop.f32.mrb[0].mxu0
        %v1637 = vadd.f32 %v609, %v1636
        %v1638 = vpop.f32.mrb[0].mxu0
        %1639 = vmatprep.mubr.bf16.mxu0 %v453
        %1640 = vmatmul.mubr.bf16.gmra.mrb[0].mxu0 %v452
        %v1641 = vpop.f32.mrb[0].mxu0
        %v1642 = vadd.f32 %v609, %v1641
        %v1643 = vpop.f32.mrb[0].mxu0
        %v1644 = vpop.f32.mrb[0].mxu0
        %v1645 = vadd.f32 %v609, %v1644
        %v1646 = vpop.f32.mrb[0].mxu0
        %1647 = vmatprep.mubr.bf16.mxu0 %v457
        %1648 = vmatmul.mubr.bf16.gmra.mrb[0].mxu0 %v456
        %v1649 = vpop.f32.mrb[0].mxu0
        %v1650 = vadd.f32 %v609, %v1649
        %v1651 = vpop.f32.mrb[0].mxu0
        %v1652 = vpop.f32.mrb[0].mxu0
        %v1653 = vadd.f32 %v609, %v1652
        %v1654 = vpop.f32.mrb[0].mxu0
        %1655 = vmatprep.mubr.bf16.mxu0 %v461
        %1656 = vmatmul.mubr.bf16.gmra.mrb[0].mxu0 %v460
        %v1657 = vpop.f32.mrb[0].mxu0
        %v1658 = vadd.f32 %v609, %v1657
        %v1659 = vpop.f32.mrb[0].mxu0
        %v1660 = vpop.f32.mrb[0].mxu0
        %v1661 = vadd.f32 %v609, %v1660
        %v1662 = vpop.f32.mrb[0].mxu0
        %1663 = vmatprep.mubr.bf16.mxu0 %v465
        %1664 = vmatmul.mubr.bf16.gmra.mrb[0].mxu0 %v464
        %v1665 = vpop.f32.mrb[0].mxu0
        %v1666 = vadd.f32 %v609, %v1665
        %v1667 = vpop.f32.mrb[0].mxu0
        %v1668 = vpop.f32.mrb[0].mxu0
        %v1669 = vadd.f32 %v609, %v1668
        %v1670 = vpop.f32.mrb[0].mxu0
        %1671 = vdwg.mxu0
        %1672 = vmatprep.subr.bf16.mxu0 0
        %1673 = vmatpush1.bf16.msra.mxu0 %v983
        %1674 = vmatprep.subr.bf16.mxu0 0
        %1675 = vmatpush1.bf16.msra.mxu0 %v986
        %1676 = vmatprep.subr.bf16.mxu0 0
        %1677 = vmatpush1.bf16.msra.mxu0 %v989
        %1678 = vmatprep.subr.bf16.mxu0 0
        %1679 = vmatpush1.bf16.msra.mxu0 %v992
        %1680 = vmatprep.subr.bf16.mxu0 0
        %1681 = vmatpush1.bf16.msra.mxu0 %v995
        %1682 = vmatprep.subr.bf16.mxu0 0
        %1683 = vmatpush1.bf16.msra.mxu0 %v998
        %1684 = vmatprep.subr.bf16.mxu0 0
        %1685 = vmatpush1.bf16.msra.mxu0 %v1001
        %1686 = vmatprep.subr.bf16.mxu0 0
        %1687 = vmatpush1.bf16.msra.mxu0 %v1004
        %1688 = vmatprep.subr.bf16.mxu0 0
        %1689 = vmatpush1.bf16.msra.mxu0 %v1007
        %1690 = vmatprep.subr.bf16.mxu0 0
        %1691 = vmatpush1.bf16.msra.mxu0 %v1010
        %1692 = vmatprep.subr.bf16.mxu0 0
        %1693 = vmatpush1.bf16.msra.mxu0 %v1013
        %1694 = vmatprep.subr.bf16.mxu0 0
        %1695 = vmatpush1.bf16.msra.mxu0 %v1016
        %1696 = vmatprep.subr.bf16.mxu0 0
        %1697 = vmatpush1.bf16.msra.mxu0 %v1019
        %1698 = vmatprep.subr.bf16.mxu0 0
        %1699 = vmatpush1.bf16.msra.mxu0 %v1022
        %1700 = vmatprep.subr.bf16.mxu0 0
        %1701 = vmatpush1.bf16.msra.mxu0 %v1025
        %1702 = vmatprep.subr.bf16.mxu0 0
        %1703 = vmatpush1.bf16.msra.mxu0 %v1028
        %1704 = vmatprep.mubr.bf16.mxu0 %v407
        %1705 = vmatmul.mubr.bf16.gmra.mrb[0].mxu0 %v406
        %v1706 = vpop.f32.mrb[0].mxu0
        %v1707 = vadd.f32 %v1546, %v1706
        %v1708 = vpop.f32.mrb[0].mxu0
        %v1709 = vpop.f32.mrb[0].mxu0
        %v1710 = vadd.f32 %v1549, %v1709
        %v1711 = vpop.f32.mrb[0].mxu0
        %1712 = vmatprep.mubr.bf16.mxu0 %v411
        %1713 = vmatmul.mubr.bf16.gmra.mrb[0].mxu0 %v410
        %v1714 = vpop.f32.mrb[0].mxu0
        %v1715 = vadd.f32 %v1554, %v1714
        %v1716 = vpop.f32.mrb[0].mxu0
        %v1717 = vpop.f32.mrb[0].mxu0
        %v1718 = vadd.f32 %v1557, %v1717
        %v1719 = vpop.f32.mrb[0].mxu0
        %1720 = vmatprep.mubr.bf16.mxu0 %v415
        %1721 = vmatmul.mubr.bf16.gmra.mrb[0].mxu0 %v414
        %v1722 = vpop.f32.mrb[0].mxu0
        %v1723 = vadd.f32 %v1562, %v1722
        %v1724 = vpop.f32.mrb[0].mxu0
        %v1725 = vpop.f32.mrb[0].mxu0
        %v1726 = vadd.f32 %v1565, %v1725
        %v1727 = vpop.f32.mrb[0].mxu0
        %1728 = vmatprep.mubr.bf16.mxu0 %v419
        %1729 = vmatmul.mubr.bf16.gmra.mrb[0].mxu0 %v418
        %v1730 = vpop.f32.mrb[0].mxu0
        %v1731 = vadd.f32 %v1570, %v1730
        %v1732 = vpop.f32.mrb[0].mxu0
        %v1733 = vpop.f32.mrb[0].mxu0
        %v1734 = vadd.f32 %v1573, %v1733
        %v1735 = vpop.f32.mrb[0].mxu0
        %1736 = vmatprep.mubr.bf16.mxu0 %v423
        %1737 = vmatmul.mubr.bf16.gmra.mrb[0].mxu0 %v422
        %v1738 = vpop.f32.mrb[0].mxu0
        %v1739 = vadd.f32 %v1578, %v1738
        %v1740 = vpop.f32.mrb[0].mxu0
        %v1741 = vpop.f32.mrb[0].mxu0
        %v1742 = vadd.f32 %v1581, %v1741
        %v1743 = vpop.f32.mrb[0].mxu0
        %1744 = vmatprep.mubr.bf16.mxu0 %v427
        %1745 = vmatmul.mubr.bf16.gmra.mrb[0].mxu0 %v426
        %v1746 = vpop.f32.mrb[0].mxu0
        %v1747 = vadd.f32 %v1586, %v1746
        %v1748 = vpop.f32.mrb[0].mxu0
        %v1749 = vpop.f32.mrb[0].mxu0
        %v1750 = vadd.f32 %v1589, %v1749
        %v1751 = vpop.f32.mrb[0].mxu0
        %1752 = vmatprep.mubr.bf16.mxu0 %v431
        %1753 = vmatmul.mubr.bf16.gmra.mrb[0].mxu0 %v430
        %v1754 = vpop.f32.mrb[0].mxu0
        %v1755 = vadd.f32 %v1594, %v1754
        %v1756 = vpop.f32.mrb[0].mxu0
        %v1757 = vpop.f32.mrb[0].mxu0
        %v1758 = vadd.f32 %v1597, %v1757
        %v1759 = vpop.f32.mrb[0].mxu0
        %1760 = vmatprep.mubr.bf16.mxu0 %v435
        %1761 = vmatmul.mubr.bf16.gmra.mrb[0].mxu0 %v434
        %v1762 = vpop.f32.mrb[0].mxu0
        %v1763 = vadd.f32 %v1602, %v1762
        %v1764 = vpop.f32.mrb[0].mxu0
        %v1765 = vpop.f32.mrb[0].mxu0
        %v1766 = vadd.f32 %v1605, %v1765
        %v1767 = vpop.f32.mrb[0].mxu0
        %1768 = vmatprep.mubr.bf16.mxu0 %v439
        %1769 = vmatmul.mubr.bf16.gmra.mrb[0].mxu0 %v438
        %v1770 = vpop.f32.mrb[0].mxu0
        %v1771 = vadd.f32 %v1610, %v1770
        %v1772 = vpop.f32.mrb[0].mxu0
        %v1773 = vpop.f32.mrb[0].mxu0
        %v1774 = vadd.f32 %v1613, %v1773
        %v1775 = vpop.f32.mrb[0].mxu0
        %1776 = vmatprep.mubr.bf16.mxu0 %v443
        %1777 = vmatmul.mubr.bf16.gmra.mrb[0].mxu0 %v442
        %v1778 = vpop.f32.mrb[0].mxu0
        %v1779 = vadd.f32 %v1618, %v1778
        %v1780 = vpop.f32.mrb[0].mxu0
        %v1781 = vpop.f32.mrb[0].mxu0
        %v1782 = vadd.f32 %v1621, %v1781
        %v1783 = vpop.f32.mrb[0].mxu0
        %1784 = vmatprep.mubr.bf16.mxu0 %v447
        %1785 = vmatmul.mubr.bf16.gmra.mrb[0].mxu0 %v446
        %v1786 = vpop.f32.mrb[0].mxu0
        %v1787 = vadd.f32 %v1626, %v1786
        %v1788 = vpop.f32.mrb[0].mxu0
        %v1789 = vpop.f32.mrb[0].mxu0
        %v1790 = vadd.f32 %v1629, %v1789
        %v1791 = vpop.f32.mrb[0].mxu0
        %1792 = vmatprep.mubr.bf16.mxu0 %v451
        %1793 = vmatmul.mubr.bf16.gmra.mrb[0].mxu0 %v450
        %v1794 = vpop.f32.mrb[0].mxu0
        %v1795 = vadd.f32 %v1634, %v1794
        %v1796 = vpop.f32.mrb[0].mxu0
        %v1797 = vpop.f32.mrb[0].mxu0
        %v1798 = vadd.f32 %v1637, %v1797
        %v1799 = vpop.f32.mrb[0].mxu0
        %1800 = vmatprep.mubr.bf16.mxu0 %v455
        %1801 = vmatmul.mubr.bf16.gmra.mrb[0].mxu0 %v454
        %v1802 = vpop.f32.mrb[0].mxu0
        %v1803 = vadd.f32 %v1642, %v1802
        %v1804 = vpop.f32.mrb[0].mxu0
        %v1805 = vpop.f32.mrb[0].mxu0
        %v1806 = vadd.f32 %v1645, %v1805
        %v1807 = vpop.f32.mrb[0].mxu0
        %1808 = vmatprep.mubr.bf16.mxu0 %v459
        %1809 = vmatmul.mubr.bf16.gmra.mrb[0].mxu0 %v458
        %v1810 = vpop.f32.mrb[0].mxu0
        %v1811 = vadd.f32 %v1650, %v1810
        %v1812 = vpop.f32.mrb[0].mxu0
        %v1813 = vpop.f32.mrb[0].mxu0
        %v1814 = vadd.f32 %v1653, %v1813
        %v1815 = vpop.f32.mrb[0].mxu0
        %1816 = vmatprep.mubr.bf16.mxu0 %v463
        %1817 = vmatmul.mubr.bf16.gmra.mrb[0].mxu0 %v462
        %v1818 = vpop.f32.mrb[0].mxu0
        %v1819 = vadd.f32 %v1658, %v1818
        %v1820 = vpop.f32.mrb[0].mxu0
        %v1821 = vpop.f32.mrb[0].mxu0
        %v1822 = vadd.f32 %v1661, %v1821
        %v1823 = vpop.f32.mrb[0].mxu0
        %1824 = vmatprep.mubr.bf16.mxu0 %v467
        %1825 = vmatmul.mubr.bf16.gmra.mrb[0].mxu0 %v466
        %v1826 = vpop.f32.mrb[0].mxu0
        %v1827 = vadd.f32 %v1666, %v1826
        %v1828 = vpop.f32.mrb[0].mxu0
        %v1829 = vpop.f32.mrb[0].mxu0
        %v1830 = vadd.f32 %v1669, %v1829
        %v1831 = vpop.f32.mrb[0].mxu0
        %1832 = vdwg.mxu0
        %v1833 = vmax.f32 %v1353, 0.0
        %v1834 = vmax.f32 %v1355, 0.0
        %v1835 = vmax.f32 %v1707, 0.0
        %v1836 = vmax.f32 %v1357, 0.0
        %v1837 = vmax.f32 %v1359, 0.0
        %v1838 = vmax.f32 %v1710, 0.0
        %v1839 = vmax.f32 %v1363, 0.0
        %v1840 = vmax.f32 %v1365, 0.0
        %v1841 = vmax.f32 %v1715, 0.0
        %v1842 = vmax.f32 %v1367, 0.0
        %v1843 = vmax.f32 %v1369, 0.0
        %v1844 = vmax.f32 %v1718, 0.0
        %v1845 = vmax.f32 %v1373, 0.0
        %v1846 = vmax.f32 %v1375, 0.0
        %v1847 = vmax.f32 %v1723, 0.0
        %v1848 = vmax.f32 %v1377, 0.0
        %v1849 = vmax.f32 %v1379, 0.0
        %v1850 = vmax.f32 %v1726, 0.0
        %v1851 = vmax.f32 %v1383, 0.0
        %v1852 = vmax.f32 %v1385, 0.0
        %v1853 = vmax.f32 %v1731, 0.0
        %v1854 = vmax.f32 %v1387, 0.0
        %v1855 = vmax.f32 %v1389, 0.0
        %v1856 = vmax.f32 %v1734, 0.0
        %v1857 = vmax.f32 %v1393, 0.0
        %v1858 = vmax.f32 %v1395, 0.0
        %v1859 = vmax.f32 %v1739, 0.0
        %v1860 = vmax.f32 %v1397, 0.0
        %v1861 = vmax.f32 %v1399, 0.0
        %v1862 = vmax.f32 %v1742, 0.0
        %v1863 = vmax.f32 %v1403, 0.0
        %v1864 = vmax.f32 %v1405, 0.0
        %v1865 = vmax.f32 %v1747, 0.0
        %v1866 = vmax.f32 %v1407, 0.0
        %v1867 = vmax.f32 %v1409, 0.0
        %v1868 = vmax.f32 %v1750, 0.0
        %v1869 = vmax.f32 %v1413, 0.0
        %v1870 = vmax.f32 %v1415, 0.0
        %v1871 = vmax.f32 %v1755, 0.0
        %v1872 = vmax.f32 %v1417, 0.0
        %v1873 = vmax.f32 %v1419, 0.0
        %v1874 = vmax.f32 %v1758, 0.0
        %v1875 = vmax.f32 %v1423, 0.0
        %v1876 = vmax.f32 %v1425, 0.0
        %v1877 = vmax.f32 %v1763, 0.0
        %v1878 = vmax.f32 %v1427, 0.0
        %v1879 = vmax.f32 %v1429, 0.0
        %v1880 = vmax.f32 %v1766, 0.0
        %v1881 = vmax.f32 %v1433, 0.0
        %v1882 = vmax.f32 %v1435, 0.0
        %v1883 = vmax.f32 %v1771, 0.0
        %v1884 = vmax.f32 %v1437, 0.0
        %v1885 = vmax.f32 %v1439, 0.0
        %v1886 = vmax.f32 %v1774, 0.0
        %v1887 = vmax.f32 %v1443, 0.0
        %v1888 = vmax.f32 %v1445, 0.0
        %v1889 = vmax.f32 %v1779, 0.0
        %v1890 = vmax.f32 %v1447, 0.0
        %v1891 = vmax.f32 %v1449, 0.0
        %v1892 = vmax.f32 %v1782, 0.0
        %v1893 = vmax.f32 %v1453, 0.0
        %v1894 = vmax.f32 %v1455, 0.0
        %v1895 = vmax.f32 %v1787, 0.0
        %v1896 = vmax.f32 %v1457, 0.0
        %v1897 = vmax.f32 %v1459, 0.0
        %v1898 = vmax.f32 %v1790, 0.0
        %v1899 = vmax.f32 %v1463, 0.0
        %v1900 = vmax.f32 %v1465, 0.0
        %v1901 = vmax.f32 %v1795, 0.0
        %v1902 = vmax.f32 %v1467, 0.0
        %v1903 = vmax.f32 %v1469, 0.0
        %v1904 = vmax.f32 %v1798, 0.0
        %v1905 = vmax.f32 %v1473, 0.0
        %v1906 = vmax.f32 %v1475, 0.0
        %v1907 = vmax.f32 %v1803, 0.0
        %v1908 = vmax.f32 %v1477, 0.0
        %v1909 = vmax.f32 %v1479, 0.0
        %v1910 = vmax.f32 %v1806, 0.0
        %v1911 = vmax.f32 %v1483, 0.0
        %v1912 = vmax.f32 %v1485, 0.0
        %v1913 = vmax.f32 %v1811, 0.0
        %v1914 = vmax.f32 %v1487, 0.0
        %v1915 = vmax.f32 %v1489, 0.0
        %v1916 = vmax.f32 %v1814, 0.0
        %v1917 = vmax.f32 %v1493, 0.0
        %v1918 = vmax.f32 %v1495, 0.0
        %v1919 = vmax.f32 %v1819, 0.0
        %v1920 = vmax.f32 %v1497, 0.0
        %v1921 = vmax.f32 %v1499, 0.0
        %v1922 = vmax.f32 %v1822, 0.0
        %v1923 = vmax.f32 %v1503, 0.0
        %v1924 = vmax.f32 %v1505, 0.0
        %v1925 = vmax.f32 %v1827, 0.0
        %v1926 = vmax.f32 %v1507, 0.0
        %v1927 = vmax.f32 %v1509, 0.0
        %v1928 = vmax.f32 %v1830, 0.0
        %v1929 = vpack.c.bf16 %v1836, %v1833
        %v1930 = vpack.c.bf16 %v1837, %v1834
        %v1931 = vpack.c.bf16 %v1838, %v1835
        %v1932 = vpack.c.bf16 %v1842, %v1839
        %v1933 = vpack.c.bf16 %v1843, %v1840
        %v1934 = vpack.c.bf16 %v1844, %v1841
        %v1935 = vpack.c.bf16 %v1848, %v1845
        %v1936 = vpack.c.bf16 %v1849, %v1846
        %v1937 = vpack.c.bf16 %v1850, %v1847
        %v1938 = vpack.c.bf16 %v1854, %v1851
        %v1939 = vpack.c.bf16 %v1855, %v1852
        %v1940 = vpack.c.bf16 %v1856, %v1853
        %v1941 = vpack.c.bf16 %v1860, %v1857
        %v1942 = vpack.c.bf16 %v1861, %v1858
        %v1943 = vpack.c.bf16 %v1862, %v1859
        %v1944 = vpack.c.bf16 %v1866, %v1863
        %v1945 = vpack.c.bf16 %v1867, %v1864
        %v1946 = vpack.c.bf16 %v1868, %v1865
        %v1947 = vpack.c.bf16 %v1872, %v1869
        %v1948 = vpack.c.bf16 %v1873, %v1870
        %v1949 = vpack.c.bf16 %v1874, %v1871
        %v1950 = vpack.c.bf16 %v1878, %v1875
        %v1951 = vpack.c.bf16 %v1879, %v1876
        %v1952 = vpack.c.bf16 %v1880, %v1877
        %v1953 = vpack.c.bf16 %v1884, %v1881
        %v1954 = vpack.c.bf16 %v1885, %v1882
        %v1955 = vpack.c.bf16 %v1886, %v1883
        %v1956 = vpack.c.bf16 %v1890, %v1887
        %v1957 = vpack.c.bf16 %v1891, %v1888
        %v1958 = vpack.c.bf16 %v1892, %v1889
        %v1959 = vpack.c.bf16 %v1896, %v1893
        %v1960 = vpack.c.bf16 %v1897, %v1894
        %v1961 = vpack.c.bf16 %v1898, %v1895
        %v1962 = vpack.c.bf16 %v1902, %v1899
        %v1963 = vpack.c.bf16 %v1903, %v1900
        %v1964 = vpack.c.bf16 %v1904, %v1901
        %v1965 = vpack.c.bf16 %v1908, %v1905
        %v1966 = vpack.c.bf16 %v1909, %v1906
        %v1967 = vpack.c.bf16 %v1910, %v1907
        %v1968 = vpack.c.bf16 %v1914, %v1911
        %v1969 = vpack.c.bf16 %v1915, %v1912
        %v1970 = vpack.c.bf16 %v1916, %v1913
        %v1971 = vpack.c.bf16 %v1920, %v1917
        %v1972 = vpack.c.bf16 %v1921, %v1918
        %v1973 = vpack.c.bf16 %v1922, %v1919
        %v1974 = vpack.c.bf16 %v1926, %v1923
        %v1975 = vpack.c.bf16 %v1927, %v1924
        %v1976 = vpack.c.bf16 %v1928, %v1925
        %v1977 = vld [vmem:[#allocation7] sm:$0xff]
        %v1978 = vld [vmem:[#allocation7 + $0x8] sm:$0xff]
        %v1979 = vld [vmem:[#allocation7 + $0x10] sm:$0xff]
        %v1980 = vld [vmem:[#allocation7 + $0x18] sm:$0xff]
        %v1981 = vld [vmem:[#allocation7 + $0x20] sm:$0xff]
        %v1982 = vld [vmem:[#allocation7 + $0x28] sm:$0xff]
        %v1983 = vld [vmem:[#allocation7 + $0x30] sm:$0xff]
        %v1984 = vld [vmem:[#allocation7 + $0x38] sm:$0xff]
        %v1985 = vld [vmem:[#allocation7 + $0x40] sm:$0xff]
        %v1986 = vld [vmem:[#allocation7 + $0x48] sm:$0xff]
        %v1987 = vld [vmem:[#allocation7 + $0x50] sm:$0xff]
        %v1988 = vld [vmem:[#allocation7 + $0x58] sm:$0xff]
        %v1989 = vld [vmem:[#allocation7 + $0x60] sm:$0xff]
        %v1990 = vld [vmem:[#allocation7 + $0x68] sm:$0xff]
        %v1991 = vld [vmem:[#allocation7 + $0x70] sm:$0xff]
        %v1992 = vld [vmem:[#allocation7 + $0x78] sm:$0xff]
        %v1993 = vld [vmem:[#allocation7 + $0x80] sm:$0xff]
        %v1994 = vld [vmem:[#allocation7 + $0x88] sm:$0xff]
        %v1995 = vld [vmem:[#allocation7 + $0x90] sm:$0xff]
        %v1996 = vld [vmem:[#allocation7 + $0x98] sm:$0xff]
        %v1997 = vld [vmem:[#allocation7 + $0xa0] sm:$0xff]
        %v1998 = vld [vmem:[#allocation7 + $0xa8] sm:$0xff]
        %v1999 = vld [vmem:[#allocation7 + $0xb0] sm:$0xff]
        %v2000 = vld [vmem:[#allocation7 + $0xb8] sm:$0xff]
        %v2001 = vld [vmem:[#allocation7 + $0xc0] sm:$0xff]
        %v2002 = vld [vmem:[#allocation7 + $0xc8] sm:$0xff]
        %v2003 = vld [vmem:[#allocation7 + $0xd0] sm:$0xff]
        %v2004 = vld [vmem:[#allocation7 + $0xd8] sm:$0xff]
        %v2005 = vld [vmem:[#allocation7 + $0xe0] sm:$0xff]
        %v2006 = vld [vmem:[#allocation7 + $0xe8] sm:$0xff]
        %v2007 = vld [vmem:[#allocation7 + $0xf0] sm:$0xff]
        %v2008 = vld [vmem:[#allocation7 + $0xf8] sm:$0xff]
        %v2009 = vld [vmem:[#allocation7 + $0x100] sm:$0xff]
        %v2010 = vld [vmem:[#allocation7 + $0x108] sm:$0xff]
        %v2011 = vld [vmem:[#allocation7 + $0x110] sm:$0xff]
        %v2012 = vld [vmem:[#allocation7 + $0x118] sm:$0xff]
        %v2013 = vld [vmem:[#allocation7 + $0x120] sm:$0xff]
        %v2014 = vld [vmem:[#allocation7 + $0x128] sm:$0xff]
        %v2015 = vld [vmem:[#allocation7 + $0x130] sm:$0xff]
        %v2016 = vld [vmem:[#allocation7 + $0x138] sm:$0xff]
        %v2017 = vld [vmem:[#allocation7 + $0x140] sm:$0xff]
        %v2018 = vld [vmem:[#allocation7 + $0x148] sm:$0xff]
        %v2019 = vld [vmem:[#allocation7 + $0x150] sm:$0xff]
        %v2020 = vld [vmem:[#allocation7 + $0x158] sm:$0xff]
        %v2021 = vld [vmem:[#allocation7 + $0x160] sm:$0xff]
        %v2022 = vld [vmem:[#allocation7 + $0x168] sm:$0xff]
        %v2023 = vld [vmem:[#allocation7 + $0x170] sm:$0xff]
        %v2024 = vld [vmem:[#allocation7 + $0x178] sm:$0xff]
        %v2025 = vld [vmem:[%s4] sm:$0x3]
        %v2027 = vlaneseq
        %v2028 = vshrl.u32 %v2027, 7
        %v2029 = vsub.s32 0, %v2028
        %v2030 = vrot.slane %v2025, %v2029
        %v2031 = vlaneseq
        %v2032 = vshrl.u32 %v2031, 7
        %v2033 = vsub.s32 1, %v2032
        %v2034 = vrot.slane %v2025, %v2033
        %v2085 = vunpack.c.l.b16 %v1977
        %v2086 = vunpack.c.h.b16 %v1977
        %v2087 = vunpack.c.l.b16 %v1978
        %v2088 = vunpack.c.h.b16 %v1978
        %v2089 = vunpack.c.l.b16 %v1979
        %v2090 = vunpack.c.h.b16 %v1979
        %v2091 = vunpack.c.l.b16 %v1980
        %v2092 = vunpack.c.h.b16 %v1980
        %v2093 = vunpack.c.l.b16 %v1981
        %v2094 = vunpack.c.h.b16 %v1981
        %v2095 = vunpack.c.l.b16 %v1982
        %v2096 = vunpack.c.h.b16 %v1982
        %v2097 = vunpack.c.l.b16 %v1983
        %v2098 = vunpack.c.h.b16 %v1983
        %v2099 = vunpack.c.l.b16 %v1984
        %v2100 = vunpack.c.h.b16 %v1984
        %v2101 = vunpack.c.l.b16 %v1985
        %v2102 = vunpack.c.h.b16 %v1985
        %v2103 = vunpack.c.l.b16 %v1986
        %v2104 = vunpack.c.h.b16 %v1986
        %v2105 = vunpack.c.l.b16 %v1987
        %v2106 = vunpack.c.h.b16 %v1987
        %v2107 = vunpack.c.l.b16 %v1988
        %v2108 = vunpack.c.h.b16 %v1988
        %v2109 = vunpack.c.l.b16 %v1989
        %v2110 = vunpack.c.h.b16 %v1989
        %v2111 = vunpack.c.l.b16 %v1990
        %v2112 = vunpack.c.h.b16 %v1990
        %v2113 = vunpack.c.l.b16 %v1991
        %v2114 = vunpack.c.h.b16 %v1991
        %v2115 = vunpack.c.l.b16 %v1992
        %v2116 = vunpack.c.h.b16 %v1992
        %v2117 = vunpack.c.l.b16 %v1993
        %v2118 = vunpack.c.h.b16 %v1993
        %v2119 = vunpack.c.l.b16 %v1994
        %v2120 = vunpack.c.h.b16 %v1994
        %v2121 = vunpack.c.l.b16 %v1995
        %v2122 = vunpack.c.h.b16 %v1995
        %v2123 = vunpack.c.l.b16 %v1996
        %v2124 = vunpack.c.h.b16 %v1996
        %v2125 = vunpack.c.l.b16 %v1997
        %v2126 = vunpack.c.h.b16 %v1997
        %v2127 = vunpack.c.l.b16 %v1998
        %v2128 = vunpack.c.h.b16 %v1998
        %v2129 = vunpack.c.l.b16 %v1999
        %v2130 = vunpack.c.h.b16 %v1999
        %v2131 = vunpack.c.l.b16 %v2000
        %v2132 = vunpack.c.h.b16 %v2000
        %v2133 = vunpack.c.l.b16 %v2001
        %v2134 = vunpack.c.h.b16 %v2001
        %v2135 = vunpack.c.l.b16 %v2002
        %v2136 = vunpack.c.h.b16 %v2002
        %v2137 = vunpack.c.l.b16 %v2003
        %v2138 = vunpack.c.h.b16 %v2003
        %v2139 = vunpack.c.l.b16 %v2004
        %v2140 = vunpack.c.h.b16 %v2004
        %v2141 = vunpack.c.l.b16 %v2005
        %v2142 = vunpack.c.h.b16 %v2005
        %v2143 = vunpack.c.l.b16 %v2006
        %v2144 = vunpack.c.h.b16 %v2006
        %v2145 = vunpack.c.l.b16 %v2007
        %v2146 = vunpack.c.h.b16 %v2007
        %v2147 = vunpack.c.l.b16 %v2008
        %v2148 = vunpack.c.h.b16 %v2008
        %v2149 = vunpack.c.l.b16 %v2009
        %v2150 = vunpack.c.h.b16 %v2009
        %v2151 = vunpack.c.l.b16 %v2010
        %v2152 = vunpack.c.h.b16 %v2010
        %v2153 = vunpack.c.l.b16 %v2011
        %v2154 = vunpack.c.h.b16 %v2011
        %v2155 = vunpack.c.l.b16 %v2012
        %v2156 = vunpack.c.h.b16 %v2012
        %v2157 = vunpack.c.l.b16 %v2013
        %v2158 = vunpack.c.h.b16 %v2013
        %v2159 = vunpack.c.l.b16 %v2014
        %v2160 = vunpack.c.h.b16 %v2014
        %v2161 = vunpack.c.l.b16 %v2015
        %v2162 = vunpack.c.h.b16 %v2015
        %v2163 = vunpack.c.l.b16 %v2016
        %v2164 = vunpack.c.h.b16 %v2016
        %v2165 = vunpack.c.l.b16 %v2017
        %v2166 = vunpack.c.h.b16 %v2017
        %v2167 = vunpack.c.l.b16 %v2018
        %v2168 = vunpack.c.h.b16 %v2018
        %v2169 = vunpack.c.l.b16 %v2019
        %v2170 = vunpack.c.h.b16 %v2019
        %v2171 = vunpack.c.l.b16 %v2020
        %v2172 = vunpack.c.h.b16 %v2020
        %v2173 = vunpack.c.l.b16 %v2021
        %v2174 = vunpack.c.h.b16 %v2021
        %v2175 = vunpack.c.l.b16 %v2022
        %v2176 = vunpack.c.h.b16 %v2022
        %v2177 = vunpack.c.l.b16 %v2023
        %v2178 = vunpack.c.h.b16 %v2023
        %v2179 = vunpack.c.l.b16 %v2024
        %v2180 = vunpack.c.h.b16 %v2024
        %v2181 = vpack.c.b16 %v2087, %v2085
        %v2182 = vpack.c.b16 %v2088, %v2086
        %v2183 = vpack.c.b16 %v2091, %v2089
        %v2184 = vpack.c.b16 %v2092, %v2090
        %v2185 = vpack.c.b16 %v2095, %v2093
        %v2186 = vpack.c.b16 %v2096, %v2094
        %v2187 = vpack.c.b16 %v2099, %v2097
        %v2188 = vpack.c.b16 %v2100, %v2098
        %v2189 = vpack.c.b16 %v2103, %v2101
        %v2190 = vpack.c.b16 %v2104, %v2102
        %v2191 = vpack.c.b16 %v2107, %v2105
        %v2192 = vpack.c.b16 %v2108, %v2106
        %v2193 = vpack.c.b16 %v2111, %v2109
        %v2194 = vpack.c.b16 %v2112, %v2110
        %v2195 = vpack.c.b16 %v2115, %v2113
        %v2196 = vpack.c.b16 %v2116, %v2114
        %v2197 = vpack.c.b16 %v2119, %v2117
        %v2198 = vpack.c.b16 %v2120, %v2118
        %v2199 = vpack.c.b16 %v2123, %v2121
        %v2200 = vpack.c.b16 %v2124, %v2122
        %v2201 = vpack.c.b16 %v2127, %v2125
        %v2202 = vpack.c.b16 %v2128, %v2126
        %v2203 = vpack.c.b16 %v2131, %v2129
        %v2204 = vpack.c.b16 %v2132, %v2130
        %v2205 = vpack.c.b16 %v2135, %v2133
        %v2206 = vpack.c.b16 %v2136, %v2134
        %v2207 = vpack.c.b16 %v2139, %v2137
        %v2208 = vpack.c.b16 %v2140, %v2138
        %v2209 = vpack.c.b16 %v2143, %v2141
        %v2210 = vpack.c.b16 %v2144, %v2142
        %v2211 = vpack.c.b16 %v2147, %v2145
        %v2212 = vpack.c.b16 %v2148, %v2146
        %v2213 = vpack.c.b16 %v2151, %v2149
        %v2214 = vpack.c.b16 %v2152, %v2150
        %v2215 = vpack.c.b16 %v2155, %v2153
        %v2216 = vpack.c.b16 %v2156, %v2154
        %v2217 = vpack.c.b16 %v2159, %v2157
        %v2218 = vpack.c.b16 %v2160, %v2158
        %v2219 = vpack.c.b16 %v2163, %v2161
        %v2220 = vpack.c.b16 %v2164, %v2162
        %v2221 = vpack.c.b16 %v2167, %v2165
        %v2222 = vpack.c.b16 %v2168, %v2166
        %v2223 = vpack.c.b16 %v2171, %v2169
        %v2224 = vpack.c.b16 %v2172, %v2170
        %v2225 = vpack.c.b16 %v2175, %v2173
        %v2226 = vpack.c.b16 %v2176, %v2174
        %v2227 = vpack.c.b16 %v2179, %v2177
        %v2228 = vpack.c.b16 %v2180, %v2178
        %2277 = vmatprep.subr.bf16.mxu0 %v2182
        %2278 = vmatpush1.bf16.msra.mxu0 %v2181
        %2279 = vmatprep.subr.bf16.mxu0 %v2184
        %2280 = vmatpush1.bf16.msra.mxu0 %v2183
        %2281 = vmatprep.subr.bf16.mxu0 %v2186
        %2282 = vmatpush1.bf16.msra.mxu0 %v2185
        %2283 = vmatprep.subr.bf16.mxu0 %v2188
        %2284 = vmatpush1.bf16.msra.mxu0 %v2187
        %2285 = vmatprep.subr.bf16.mxu0 %v2190
        %2286 = vmatpush1.bf16.msra.mxu0 %v2189
        %2287 = vmatprep.subr.bf16.mxu0 %v2192
        %2288 = vmatpush1.bf16.msra.mxu0 %v2191
        %2289 = vmatprep.subr.bf16.mxu0 %v2194
        %2290 = vmatpush1.bf16.msra.mxu0 %v2193
        %2291 = vmatprep.subr.bf16.mxu0 %v2196
        %2292 = vmatpush1.bf16.msra.mxu0 %v2195
        %2293 = vmatprep.subr.bf16.mxu0 %v2198
        %2294 = vmatpush1.bf16.msra.mxu0 %v2197
        %2295 = vmatprep.subr.bf16.mxu0 %v2200
        %2296 = vmatpush1.bf16.msra.mxu0 %v2199
        %2297 = vmatprep.subr.bf16.mxu0 %v2202
        %2298 = vmatpush1.bf16.msra.mxu0 %v2201
        %2299 = vmatprep.subr.bf16.mxu0 %v2204
        %2300 = vmatpush1.bf16.msra.mxu0 %v2203
        %2301 = vmatprep.subr.bf16.mxu0 %v2206
        %2302 = vmatpush1.bf16.msra.mxu0 %v2205
        %2303 = vmatprep.subr.bf16.mxu0 %v2208
        %2304 = vmatpush1.bf16.msra.mxu0 %v2207
        %2305 = vmatprep.subr.bf16.mxu0 %v2210
        %2306 = vmatpush1.bf16.msra.mxu0 %v2209
        %2307 = vmatprep.subr.bf16.mxu0 %v2212
        %2308 = vmatpush1.bf16.msra.mxu0 %v2211
        %2309 = vmatprep.mubr.bf16.mxu0 %v1930
        %2310 = vmatmul.mubr.bf16.gmra.mrb[0].mxu0 %v1929
        %v2311 = vpop.f32.mrb[0].mxu0
        %v2312 = vadd.f32 %v2030, %v2311
        %v2313 = vpop.f32.mrb[0].mxu0
        %v2314 = vadd.f32 %v2034, %v2313
        %v2315 = vpop.f32.mrb[0].mxu0
        %v2316 = vadd.f32 %v2030, %v2315
        %v2317 = vpop.f32.mrb[0].mxu0
        %v2318 = vadd.f32 %v2034, %v2317
        %2319 = vmatprep.mubr.bf16.mxu0 %v1933
        %2320 = vmatmul.mubr.bf16.gmra.mrb[0].mxu0 %v1932
        %v2321 = vpop.f32.mrb[0].mxu0
        %v2322 = vadd.f32 %v2030, %v2321
        %v2323 = vpop.f32.mrb[0].mxu0
        %v2324 = vadd.f32 %v2034, %v2323
        %v2325 = vpop.f32.mrb[0].mxu0
        %v2326 = vadd.f32 %v2030, %v2325
        %v2327 = vpop.f32.mrb[0].mxu0
        %v2328 = vadd.f32 %v2034, %v2327
        %2329 = vmatprep.mubr.bf16.mxu0 %v1936
        %2330 = vmatmul.mubr.bf16.gmra.mrb[0].mxu0 %v1935
        %v2331 = vpop.f32.mrb[0].mxu0
        %v2332 = vadd.f32 %v2030, %v2331
        %v2333 = vpop.f32.mrb[0].mxu0
        %v2334 = vadd.f32 %v2034, %v2333
        %v2335 = vpop.f32.mrb[0].mxu0
        %v2336 = vadd.f32 %v2030, %v2335
        %v2337 = vpop.f32.mrb[0].mxu0
        %v2338 = vadd.f32 %v2034, %v2337
        %2339 = vmatprep.mubr.bf16.mxu0 %v1939
        %2340 = vmatmul.mubr.bf16.gmra.mrb[0].mxu0 %v1938
        %v2341 = vpop.f32.mrb[0].mxu0
        %v2342 = vadd.f32 %v2030, %v2341
        %v2343 = vpop.f32.mrb[0].mxu0
        %v2344 = vadd.f32 %v2034, %v2343
        %v2345 = vpop.f32.mrb[0].mxu0
        %v2346 = vadd.f32 %v2030, %v2345
        %v2347 = vpop.f32.mrb[0].mxu0
        %v2348 = vadd.f32 %v2034, %v2347
        %2349 = vmatprep.mubr.bf16.mxu0 %v1942
        %2350 = vmatmul.mubr.bf16.gmra.mrb[0].mxu0 %v1941
        %v2351 = vpop.f32.mrb[0].mxu0
        %v2352 = vadd.f32 %v2030, %v2351
        %v2353 = vpop.f32.mrb[0].mxu0
        %v2354 = vadd.f32 %v2034, %v2353
        %v2355 = vpop.f32.mrb[0].mxu0
        %v2356 = vadd.f32 %v2030, %v2355
        %v2357 = vpop.f32.mrb[0].mxu0
        %v2358 = vadd.f32 %v2034, %v2357
        %2359 = vmatprep.mubr.bf16.mxu0 %v1945
        %2360 = vmatmul.mubr.bf16.gmra.mrb[0].mxu0 %v1944
        %v2361 = vpop.f32.mrb[0].mxu0
        %v2362 = vadd.f32 %v2030, %v2361
        %v2363 = vpop.f32.mrb[0].mxu0
        %v2364 = vadd.f32 %v2034, %v2363
        %v2365 = vpop.f32.mrb[0].mxu0
        %v2366 = vadd.f32 %v2030, %v2365
        %v2367 = vpop.f32.mrb[0].mxu0
        %v2368 = vadd.f32 %v2034, %v2367
        %2369 = vmatprep.mubr.bf16.mxu0 %v1948
        %2370 = vmatmul.mubr.bf16.gmra.mrb[0].mxu0 %v1947
        %v2371 = vpop.f32.mrb[0].mxu0
        %v2372 = vadd.f32 %v2030, %v2371
        %v2373 = vpop.f32.mrb[0].mxu0
        %v2374 = vadd.f32 %v2034, %v2373
        %v2375 = vpop.f32.mrb[0].mxu0
        %v2376 = vadd.f32 %v2030, %v2375
        %v2377 = vpop.f32.mrb[0].mxu0
        %v2378 = vadd.f32 %v2034, %v2377
        %2379 = vmatprep.mubr.bf16.mxu0 %v1951
        %2380 = vmatmul.mubr.bf16.gmra.mrb[0].mxu0 %v1950
        %v2381 = vpop.f32.mrb[0].mxu0
        %v2382 = vadd.f32 %v2030, %v2381
        %v2383 = vpop.f32.mrb[0].mxu0
        %v2384 = vadd.f32 %v2034, %v2383
        %v2385 = vpop.f32.mrb[0].mxu0
        %v2386 = vadd.f32 %v2030, %v2385
        %v2387 = vpop.f32.mrb[0].mxu0
        %v2388 = vadd.f32 %v2034, %v2387
        %2389 = vmatprep.mubr.bf16.mxu0 %v1954
        %2390 = vmatmul.mubr.bf16.gmra.mrb[0].mxu0 %v1953
        %v2391 = vpop.f32.mrb[0].mxu0
        %v2392 = vadd.f32 %v2030, %v2391
        %v2393 = vpop.f32.mrb[0].mxu0
        %v2394 = vadd.f32 %v2034, %v2393
        %v2395 = vpop.f32.mrb[0].mxu0
        %v2396 = vadd.f32 %v2030, %v2395
        %v2397 = vpop.f32.mrb[0].mxu0
        %v2398 = vadd.f32 %v2034, %v2397
        %2399 = vmatprep.mubr.bf16.mxu0 %v1957
        %2400 = vmatmul.mubr.bf16.gmra.mrb[0].mxu0 %v1956
        %v2401 = vpop.f32.mrb[0].mxu0
        %v2402 = vadd.f32 %v2030, %v2401
        %v2403 = vpop.f32.mrb[0].mxu0
        %v2404 = vadd.f32 %v2034, %v2403
        %v2405 = vpop.f32.mrb[0].mxu0
        %v2406 = vadd.f32 %v2030, %v2405
        %v2407 = vpop.f32.mrb[0].mxu0
        %v2408 = vadd.f32 %v2034, %v2407
        %2409 = vmatprep.mubr.bf16.mxu0 %v1960
        %2410 = vmatmul.mubr.bf16.gmra.mrb[0].mxu0 %v1959
        %v2411 = vpop.f32.mrb[0].mxu0
        %v2412 = vadd.f32 %v2030, %v2411
        %v2413 = vpop.f32.mrb[0].mxu0
        %v2414 = vadd.f32 %v2034, %v2413
        %v2415 = vpop.f32.mrb[0].mxu0
        %v2416 = vadd.f32 %v2030, %v2415
        %v2417 = vpop.f32.mrb[0].mxu0
        %v2418 = vadd.f32 %v2034, %v2417
        %2419 = vmatprep.mubr.bf16.mxu0 %v1963
        %2420 = vmatmul.mubr.bf16.gmra.mrb[0].mxu0 %v1962
        %v2421 = vpop.f32.mrb[0].mxu0
        %v2422 = vadd.f32 %v2030, %v2421
        %v2423 = vpop.f32.mrb[0].mxu0
        %v2424 = vadd.f32 %v2034, %v2423
        %v2425 = vpop.f32.mrb[0].mxu0
        %v2426 = vadd.f32 %v2030, %v2425
        %v2427 = vpop.f32.mrb[0].mxu0
        %v2428 = vadd.f32 %v2034, %v2427
        %2429 = vmatprep.mubr.bf16.mxu0 %v1966
        %2430 = vmatmul.mubr.bf16.gmra.mrb[0].mxu0 %v1965
        %v2431 = vpop.f32.mrb[0].mxu0
        %v2432 = vadd.f32 %v2030, %v2431
        %v2433 = vpop.f32.mrb[0].mxu0
        %v2434 = vadd.f32 %v2034, %v2433
        %v2435 = vpop.f32.mrb[0].mxu0
        %v2436 = vadd.f32 %v2030, %v2435
        %v2437 = vpop.f32.mrb[0].mxu0
        %v2438 = vadd.f32 %v2034, %v2437
        %2439 = vmatprep.mubr.bf16.mxu0 %v1969
        %2440 = vmatmul.mubr.bf16.gmra.mrb[0].mxu0 %v1968
        %v2441 = vpop.f32.mrb[0].mxu0
        %v2442 = vadd.f32 %v2030, %v2441
        %v2443 = vpop.f32.mrb[0].mxu0
        %v2444 = vadd.f32 %v2034, %v2443
        %v2445 = vpop.f32.mrb[0].mxu0
        %v2446 = vadd.f32 %v2030, %v2445
        %v2447 = vpop.f32.mrb[0].mxu0
        %v2448 = vadd.f32 %v2034, %v2447
        %2449 = vmatprep.mubr.bf16.mxu0 %v1972
        %2450 = vmatmul.mubr.bf16.gmra.mrb[0].mxu0 %v1971
        %v2451 = vpop.f32.mrb[0].mxu0
        %v2452 = vadd.f32 %v2030, %v2451
        %v2453 = vpop.f32.mrb[0].mxu0
        %v2454 = vadd.f32 %v2034, %v2453
        %v2455 = vpop.f32.mrb[0].mxu0
        %v2456 = vadd.f32 %v2030, %v2455
        %v2457 = vpop.f32.mrb[0].mxu0
        %v2458 = vadd.f32 %v2034, %v2457
        %2459 = vmatprep.mubr.bf16.mxu0 %v1975
        %2460 = vmatmul.mubr.bf16.gmra.mrb[0].mxu0 %v1974
        %v2461 = vpop.f32.mrb[0].mxu0
        %v2462 = vadd.f32 %v2030, %v2461
        %v2463 = vpop.f32.mrb[0].mxu0
        %v2464 = vadd.f32 %v2034, %v2463
        %v2465 = vpop.f32.mrb[0].mxu0
        %v2466 = vadd.f32 %v2030, %v2465
        %v2467 = vpop.f32.mrb[0].mxu0
        %v2468 = vadd.f32 %v2034, %v2467
        %2469 = vdwg.mxu0
        %2470 = vmatprep.subr.bf16.mxu0 %v2214
        %2471 = vmatpush1.bf16.msra.mxu0 %v2213
        %2472 = vmatprep.subr.bf16.mxu0 %v2216
        %2473 = vmatpush1.bf16.msra.mxu0 %v2215
        %2474 = vmatprep.subr.bf16.mxu0 %v2218
        %2475 = vmatpush1.bf16.msra.mxu0 %v2217
        %2476 = vmatprep.subr.bf16.mxu0 %v2220
        %2477 = vmatpush1.bf16.msra.mxu0 %v2219
        %2478 = vmatprep.subr.bf16.mxu0 %v2222
        %2479 = vmatpush1.bf16.msra.mxu0 %v2221
        %2480 = vmatprep.subr.bf16.mxu0 %v2224
        %2481 = vmatpush1.bf16.msra.mxu0 %v2223
        %2482 = vmatprep.subr.bf16.mxu0 %v2226
        %2483 = vmatpush1.bf16.msra.mxu0 %v2225
        %2484 = vmatprep.subr.bf16.mxu0 %v2228
        %2485 = vmatpush1.bf16.msra.mxu0 %v2227
        %2486 = vmatprep.subr.bf16.mxu0 0
        %2487 = vmatpush1.bf16.msra.mxu0 0
        %2488 = vmatprep.subr.bf16.mxu0 0
        %2489 = vmatpush1.bf16.msra.mxu0 0
        %2490 = vmatprep.subr.bf16.mxu0 0
        %2491 = vmatpush1.bf16.msra.mxu0 0
        %2492 = vmatprep.subr.bf16.mxu0 0
        %2493 = vmatpush1.bf16.msra.mxu0 0
        %2494 = vmatprep.subr.bf16.mxu0 0
        %2495 = vmatpush1.bf16.msra.mxu0 0
        %2496 = vmatprep.subr.bf16.mxu0 0
        %2497 = vmatpush1.bf16.msra.mxu0 0
        %2498 = vmatprep.subr.bf16.mxu0 0
        %2499 = vmatpush1.bf16.msra.mxu0 0
        %2500 = vmatprep.subr.bf16.mxu0 0
        %2501 = vmatpush1.bf16.msra.mxu0 0
        %2502 = vmatprep.mubr.bf16.mxu0 0
        %2503 = vmatmul.mubr.bf16.gmra.mrb[0].mxu0 %v1931
        %v2504 = vpop.f32.mrb[0].mxu0
        %v2505 = vadd.f32 %v2312, %v2504
        %v2506 = vpop.f32.mrb[0].mxu0
        %v2507 = vadd.f32 %v2314, %v2506
        %v2508 = vpop.f32.mrb[0].mxu0
        %v2509 = vadd.f32 %v2316, %v2508
        %v2510 = vpop.f32.mrb[0].mxu0
        %v2511 = vadd.f32 %v2318, %v2510
        %2512 = vmatprep.mubr.bf16.mxu0 0
        %2513 = vmatmul.mubr.bf16.gmra.mrb[0].mxu0 %v1934
        %v2514 = vpop.f32.mrb[0].mxu0
        %v2515 = vadd.f32 %v2322, %v2514
        %v2516 = vpop.f32.mrb[0].mxu0
        %v2517 = vadd.f32 %v2324, %v2516
        %v2518 = vpop.f32.mrb[0].mxu0
        %v2519 = vadd.f32 %v2326, %v2518
        %v2520 = vpop.f32.mrb[0].mxu0
        %v2521 = vadd.f32 %v2328, %v2520
        %2522 = vmatprep.mubr.bf16.mxu0 0
        %2523 = vmatmul.mubr.bf16.gmra.mrb[0].mxu0 %v1937
        %v2524 = vpop.f32.mrb[0].mxu0
        %v2525 = vadd.f32 %v2332, %v2524
        %v2526 = vpop.f32.mrb[0].mxu0
        %v2527 = vadd.f32 %v2334, %v2526
        %v2528 = vpop.f32.mrb[0].mxu0
        %v2529 = vadd.f32 %v2336, %v2528
        %v2530 = vpop.f32.mrb[0].mxu0
        %v2531 = vadd.f32 %v2338, %v2530
        %2532 = vmatprep.mubr.bf16.mxu0 0
        %2533 = vmatmul.mubr.bf16.gmra.mrb[0].mxu0 %v1940
        %v2534 = vpop.f32.mrb[0].mxu0
        %v2535 = vadd.f32 %v2342, %v2534
        %v2536 = vpop.f32.mrb[0].mxu0
        %v2537 = vadd.f32 %v2344, %v2536
        %v2538 = vpop.f32.mrb[0].mxu0
        %v2539 = vadd.f32 %v2346, %v2538
        %v2540 = vpop.f32.mrb[0].mxu0
        %v2541 = vadd.f32 %v2348, %v2540
        %2542 = vmatprep.mubr.bf16.mxu0 0
        %2543 = vmatmul.mubr.bf16.gmra.mrb[0].mxu0 %v1943
        %v2544 = vpop.f32.mrb[0].mxu0
        %v2545 = vadd.f32 %v2352, %v2544
        %v2546 = vpop.f32.mrb[0].mxu0
        %v2547 = vadd.f32 %v2354, %v2546
        %v2548 = vpop.f32.mrb[0].mxu0
        %v2549 = vadd.f32 %v2356, %v2548
        %v2550 = vpop.f32.mrb[0].mxu0
        %v2551 = vadd.f32 %v2358, %v2550
        %2552 = vmatprep.mubr.bf16.mxu0 0
        %2553 = vmatmul.mubr.bf16.gmra.mrb[0].mxu0 %v1946
        %v2554 = vpop.f32.mrb[0].mxu0
        %v2555 = vadd.f32 %v2362, %v2554
        %v2556 = vpop.f32.mrb[0].mxu0
        %v2557 = vadd.f32 %v2364, %v2556
        %v2558 = vpop.f32.mrb[0].mxu0
        %v2559 = vadd.f32 %v2366, %v2558
        %v2560 = vpop.f32.mrb[0].mxu0
        %v2561 = vadd.f32 %v2368, %v2560
        %2562 = vmatprep.mubr.bf16.mxu0 0
        %2563 = vmatmul.mubr.bf16.gmra.mrb[0].mxu0 %v1949
        %v2564 = vpop.f32.mrb[0].mxu0
        %v2565 = vadd.f32 %v2372, %v2564
        %v2566 = vpop.f32.mrb[0].mxu0
        %v2567 = vadd.f32 %v2374, %v2566
        %v2568 = vpop.f32.mrb[0].mxu0
        %v2569 = vadd.f32 %v2376, %v2568
        %v2570 = vpop.f32.mrb[0].mxu0
        %v2571 = vadd.f32 %v2378, %v2570
        %2572 = vmatprep.mubr.bf16.mxu0 0
        %2573 = vmatmul.mubr.bf16.gmra.mrb[0].mxu0 %v1952
        %v2574 = vpop.f32.mrb[0].mxu0
        %v2575 = vadd.f32 %v2382, %v2574
        %v2576 = vpop.f32.mrb[0].mxu0
        %v2577 = vadd.f32 %v2384, %v2576
        %v2578 = vpop.f32.mrb[0].mxu0
        %v2579 = vadd.f32 %v2386, %v2578
        %v2580 = vpop.f32.mrb[0].mxu0
        %v2581 = vadd.f32 %v2388, %v2580
        %2582 = vmatprep.mubr.bf16.mxu0 0
        %2583 = vmatmul.mubr.bf16.gmra.mrb[0].mxu0 %v1955
        %v2584 = vpop.f32.mrb[0].mxu0
        %v2585 = vadd.f32 %v2392, %v2584
        %v2586 = vpop.f32.mrb[0].mxu0
        %v2587 = vadd.f32 %v2394, %v2586
        %v2588 = vpop.f32.mrb[0].mxu0
        %v2589 = vadd.f32 %v2396, %v2588
        %v2590 = vpop.f32.mrb[0].mxu0
        %v2591 = vadd.f32 %v2398, %v2590
        %2592 = vmatprep.mubr.bf16.mxu0 0
        %2593 = vmatmul.mubr.bf16.gmra.mrb[0].mxu0 %v1958
        %v2594 = vpop.f32.mrb[0].mxu0
        %v2595 = vadd.f32 %v2402, %v2594
        %v2596 = vpop.f32.mrb[0].mxu0
        %v2597 = vadd.f32 %v2404, %v2596
        %v2598 = vpop.f32.mrb[0].mxu0
        %v2599 = vadd.f32 %v2406, %v2598
        %v2600 = vpop.f32.mrb[0].mxu0
        %v2601 = vadd.f32 %v2408, %v2600
        %2602 = vmatprep.mubr.bf16.mxu0 0
        %2603 = vmatmul.mubr.bf16.gmra.mrb[0].mxu0 %v1961
        %v2604 = vpop.f32.mrb[0].mxu0
        %v2605 = vadd.f32 %v2412, %v2604
        %v2606 = vpop.f32.mrb[0].mxu0
        %v2607 = vadd.f32 %v2414, %v2606
        %v2608 = vpop.f32.mrb[0].mxu0
        %v2609 = vadd.f32 %v2416, %v2608
        %v2610 = vpop.f32.mrb[0].mxu0
        %v2611 = vadd.f32 %v2418, %v2610
        %2612 = vmatprep.mubr.bf16.mxu0 0
        %2613 = vmatmul.mubr.bf16.gmra.mrb[0].mxu0 %v1964
        %v2614 = vpop.f32.mrb[0].mxu0
        %v2615 = vadd.f32 %v2422, %v2614
        %v2616 = vpop.f32.mrb[0].mxu0
        %v2617 = vadd.f32 %v2424, %v2616
        %v2618 = vpop.f32.mrb[0].mxu0
        %v2619 = vadd.f32 %v2426, %v2618
        %v2620 = vpop.f32.mrb[0].mxu0
        %v2621 = vadd.f32 %v2428, %v2620
        %2622 = vmatprep.mubr.bf16.mxu0 0
        %2623 = vmatmul.mubr.bf16.gmra.mrb[0].mxu0 %v1967
        %v2624 = vpop.f32.mrb[0].mxu0
        %v2625 = vadd.f32 %v2432, %v2624
        %v2626 = vpop.f32.mrb[0].mxu0
        %v2627 = vadd.f32 %v2434, %v2626
        %v2628 = vpop.f32.mrb[0].mxu0
        %v2629 = vadd.f32 %v2436, %v2628
        %v2630 = vpop.f32.mrb[0].mxu0
        %v2631 = vadd.f32 %v2438, %v2630
        %2632 = vmatprep.mubr.bf16.mxu0 0
        %2633 = vmatmul.mubr.bf16.gmra.mrb[0].mxu0 %v1970
        %v2634 = vpop.f32.mrb[0].mxu0
        %v2635 = vadd.f32 %v2442, %v2634
        %v2636 = vpop.f32.mrb[0].mxu0
        %v2637 = vadd.f32 %v2444, %v2636
        %v2638 = vpop.f32.mrb[0].mxu0
        %v2639 = vadd.f32 %v2446, %v2638
        %v2640 = vpop.f32.mrb[0].mxu0
        %v2641 = vadd.f32 %v2448, %v2640
        %2642 = vmatprep.mubr.bf16.mxu0 0
        %2643 = vmatmul.mubr.bf16.gmra.mrb[0].mxu0 %v1973
        %v2644 = vpop.f32.mrb[0].mxu0
        %v2645 = vadd.f32 %v2452, %v2644
        %v2646 = vpop.f32.mrb[0].mxu0
        %v2647 = vadd.f32 %v2454, %v2646
        %v2648 = vpop.f32.mrb[0].mxu0
        %v2649 = vadd.f32 %v2456, %v2648
        %v2650 = vpop.f32.mrb[0].mxu0
        %v2651 = vadd.f32 %v2458, %v2650
        %2652 = vmatprep.mubr.bf16.mxu0 0
        %2653 = vmatmul.mubr.bf16.gmra.mrb[0].mxu0 %v1976
        %v2654 = vpop.f32.mrb[0].mxu0
        %v2655 = vadd.f32 %v2462, %v2654
        %v2656 = vpop.f32.mrb[0].mxu0
        %v2657 = vadd.f32 %v2464, %v2656
        %v2658 = vpop.f32.mrb[0].mxu0
        %v2659 = vadd.f32 %v2466, %v2658
        %v2660 = vpop.f32.mrb[0].mxu0
        %v2661 = vadd.f32 %v2468, %v2660
        %2662 = vdwg.mxu0
        %2663 = vst [vmem:[%s272] sm:$0xff] %v2505
        %2664 = vst [vmem:[%s272 + $0x8] sm:$0xff] %v2507
        %2665 = vst [vmem:[%s272 + $0x10] sm:$0xff] %v2509
        %2666 = vst [vmem:[%s272 + $0x18] sm:$0xff] %v2511
        %2667 = vst [vmem:[%s272 + $0x20] sm:$0xff] %v2515
        %2668 = vst [vmem:[%s272 + $0x28] sm:$0xff] %v2517
        %2669 = vst [vmem:[%s272 + $0x30] sm:$0xff] %v2519
        %2670 = vst [vmem:[%s272 + $0x38] sm:$0xff] %v2521
        %2671 = vst [vmem:[%s272 + $0x40] sm:$0xff] %v2525
        %2672 = vst [vmem:[%s272 + $0x48] sm:$0xff] %v2527
        %2673 = vst [vmem:[%s272 + $0x50] sm:$0xff] %v2529
        %2674 = vst [vmem:[%s272 + $0x58] sm:$0xff] %v2531
        %2675 = vst [vmem:[%s272 + $0x60] sm:$0xff] %v2535
        %2676 = vst [vmem:[%s272 + $0x68] sm:$0xff] %v2537
        %2677 = vst [vmem:[%s272 + $0x70] sm:$0xff] %v2539
        %2678 = vst [vmem:[%s272 + $0x78] sm:$0xff] %v2541
        %2679 = vst [vmem:[%s272 + $0x80] sm:$0xff] %v2545
        %2680 = vst [vmem:[%s272 + $0x88] sm:$0xff] %v2547
        %2681 = vst [vmem:[%s272 + $0x90] sm:$0xff] %v2549
        %2682 = vst [vmem:[%s272 + $0x98] sm:$0xff] %v2551
        %2683 = vst [vmem:[%s272 + $0xa0] sm:$0xff] %v2555
        %2684 = vst [vmem:[%s272 + $0xa8] sm:$0xff] %v2557
        %2685 = vst [vmem:[%s272 + $0xb0] sm:$0xff] %v2559
        %2686 = vst [vmem:[%s272 + $0xb8] sm:$0xff] %v2561
        %2687 = vst [vmem:[%s272 + $0xc0] sm:$0xff] %v2565
        %2688 = vst [vmem:[%s272 + $0xc8] sm:$0xff] %v2567
        %2689 = vst [vmem:[%s272 + $0xd0] sm:$0xff] %v2569
        %2690 = vst [vmem:[%s272 + $0xd8] sm:$0xff] %v2571
        %2691 = vst [vmem:[%s272 + $0xe0] sm:$0xff] %v2575
        %2692 = vst [vmem:[%s272 + $0xe8] sm:$0xff] %v2577
        %2693 = vst [vmem:[%s272 + $0xf0] sm:$0xff] %v2579
        %2694 = vst [vmem:[%s272 + $0xf8] sm:$0xff] %v2581
        %2695 = vst [vmem:[%s272 + $0x100] sm:$0xff] %v2585
        %2696 = vst [vmem:[%s272 + $0x108] sm:$0xff] %v2587
        %2697 = vst [vmem:[%s272 + $0x110] sm:$0xff] %v2589
        %2698 = vst [vmem:[%s272 + $0x118] sm:$0xff] %v2591
        %2699 = vst [vmem:[%s272 + $0x120] sm:$0xff] %v2595
        %2700 = vst [vmem:[%s272 + $0x128] sm:$0xff] %v2597
        %2701 = vst [vmem:[%s272 + $0x130] sm:$0xff] %v2599
        %2702 = vst [vmem:[%s272 + $0x138] sm:$0xff] %v2601
        %2703 = vst [vmem:[%s272 + $0x140] sm:$0xff] %v2605
        %2704 = vst [vmem:[%s272 + $0x148] sm:$0xff] %v2607
        %2705 = vst [vmem:[%s272 + $0x150] sm:$0xff] %v2609
        %2706 = vst [vmem:[%s272 + $0x158] sm:$0xff] %v2611
        %2707 = vst [vmem:[%s272 + $0x160] sm:$0xff] %v2615
        %2708 = vst [vmem:[%s272 + $0x168] sm:$0xff] %v2617
        %2709 = vst [vmem:[%s272 + $0x170] sm:$0xff] %v2619
        %2710 = vst [vmem:[%s272 + $0x178] sm:$0xff] %v2621
        %2711 = vst [vmem:[%s272 + $0x180] sm:$0xff] %v2625
        %2712 = vst [vmem:[%s272 + $0x188] sm:$0xff] %v2627
        %2713 = vst [vmem:[%s272 + $0x190] sm:$0xff] %v2629
        %2714 = vst [vmem:[%s272 + $0x198] sm:$0xff] %v2631
        %2715 = vst [vmem:[%s272 + $0x1a0] sm:$0xff] %v2635
        %2716 = vst [vmem:[%s272 + $0x1a8] sm:$0xff] %v2637
        %2717 = vst [vmem:[%s272 + $0x1b0] sm:$0xff] %v2639
        %2718 = vst [vmem:[%s272 + $0x1b8] sm:$0xff] %v2641
        %2719 = vst [vmem:[%s272 + $0x1c0] sm:$0xff] %v2645
        %2720 = vst [vmem:[%s272 + $0x1c8] sm:$0xff] %v2647
        %2721 = vst [vmem:[%s272 + $0x1d0] sm:$0xff] %v2649
        %2722 = vst [vmem:[%s272 + $0x1d8] sm:$0xff] %v2651
        %2723 = vst [vmem:[%s272 + $0x1e0] sm:$0xff] %v2655
        %2724 = vst [vmem:[%s272 + $0x1e8] sm:$0xff] %v2657
        %2725 = vst [vmem:[%s272 + $0x1f0] sm:$0xff] %v2659
        %2726 = vst [vmem:[%s272 + $0x1f8] sm:$0xff] %v2661
        %s2727 = sand.u32 %s141, 1
        %s2728 = scalar_lea.sflag [#allocation4], %s2727
        %s2729 = sand.u32 %s141, 1
        %s2730 = smul.addr %s2729, 512
        %s2731 = scalar_lea.vmem [#allocation8], %s2730
        // Predicated region
        $region53: #{pure_my_linear.1} parent=39 // pred_check
          %p2732 = pneg %p151
        $region54: #{pure_my_linear.1} parent=39 // pred_check_branch
          %2734 = sbr.rel (%p2732) target = $region56
        $region55: #{pure_my_linear.1} parent=39 // pred_region
          %s2735 = smul.u32 32, %s23
          %s2737 = ssub.s32 8192, 8192
          %2738 = vsyncadd %s2728, %s2737
          %s2739 = smul.addr %s2735, 2
          %s2740 = smul.addr %s2739, 128
          %s2741 = scalar_lea.hbm %s5, %s2740
          %s2742 = sshll.u32 %s2731, 4
          %s2743 = int_to_ptr.vmem [resolvable:$true] %s2742
          %2748 = dma.vmem_to_hbm [thread:$0]  %s2743, 8192, %s2741, %s2728, 256, 256, 16
        $region56: #{pure_my_linear.1} parent=39 // pred_fallthru
          _
      $region40: #{pure_my_linear.1} parent=5 // pred_fallthru
        _
      %p2749 = scmp.le.s32.totalorder 2, %s18
      // Predicated region
      $region57: #{pure_my_linear.1} parent=5 // pred_check
        %p2750 = pneg %p2749
      $region58: #{pure_my_linear.1} parent=5 // pred_check_branch
        %2752 = sbr.rel (%p2750) target = $region60
      $region59: #{pure_my_linear.1} parent=5 // pred_region
        %s2753 = ssub.s32 %s18, 2
        // Predicated region
        $region61: #{pure_my_linear.1} parent=59 // pred_check
          %p2754 = pneg %p157
        $region62: #{pure_my_linear.1} parent=59 // pred_check_branch
          %2756 = sbr.rel (%p2754) target = $region64
        $region63: #{pure_my_linear.1} parent=59 // pred_region
          %s2757 = sand.u32 %s142, 1
          %s2758 = scalar_lea.sflag [#allocation4], %s2757
          %s2759 = sand.u32 %s142, 1
          %s2760 = smul.addr %s2759, 512
          %s2761 = scalar_lea.vmem [#allocation8], %s2760
          %2762 = dma.done %s2758, 8192
        $region64: #{pure_my_linear.1} parent=59 // pred_fallthru
          _
      $region60: #{pure_my_linear.1} parent=5 // pred_fallthru
        _
    $region6: #{pure_my_linear.1} parent=1 // loop_footer
      %s22 = sadd.s32 1, %s18
    $region7: #{pure_my_linear.1} parent=1 // loop_footer_branch
      %17 = sbr.rel target = $region3
    $region8: #{pure_my_linear.1} parent=1 // loop_exit
      _
    %2763 = vsyncpa [#allocation3], 1
    %s2764 = scalar_lea.sflag [#allocation3], 1
    %2765 = vsyncpa %s2764, 1
    %2766 = vsyncpa [#allocation6], 1
    %2767 = vsyncpa [#allocation4], 1
    %s2768 = scalar_lea.sflag [#allocation4], 1
    %2769 = vsyncpa %s2768, 1

</llo_original>
